<compile_context>
chip_gen: v7x
topology: tpu7x:2x2x1
jax: 0.10.0
libtpu: 0.0.40
codegen_flags: <defaults>
</compile_context>

<pallas_src>
import jax
import jax.numpy as jnp
from jax import lax
from jax.experimental import pallas as pl
from jax.experimental.pallas import tpu as pltpu


def _round_up(x, m):
    return (x + m - 1) // m * m


def _make_dkt_kernel(T_real, TILE_T, TILE_B, IN_pad, H_pad, K_pad, CHUNK_T, unroll):
    """Builds the Pallas kernel closed over the static tiling constants."""
    needs_t_mask = (T_real % TILE_T) != 0

    def kernel(resp_ref,   # (TILE_T, TILE_B, 1) int32    responses block (time-major)
               wih_ref,    # (IN_pad, H_pad)  bf16        W_ih^T + (b_ih + b_hh)
               whh_ref,    # (H_pad, H_pad)   bf16        W_hh^T
               wfc_ref,    # (H_pad, K_pad)   bf16        W_fc^T
               bfc_ref,    # (1, K_pad)       f32
               out_ref,    # (TILE_B, TILE_T, K_pad) f32  batch-major output block
               hn_ref,     # (TILE_B, H_pad)  f32         resident final-state block
               h_scr,      # VMEM (TILE_B, H_pad) f32          hidden-state carry
               xh_scr):    # VMEM (TILE_T, TILE_B, H_pad) f32  xw slab, reused for h
        t_blk = pl.program_id(1)

        @pl.when(t_blk == 0)
        def _():
            h_scr[...] = jnp.zeros_like(h_scr)

        # ---- Prologue (NOT on the serial chain):
        # xw_s = one_hot(x_s) @ W_ih^T + b for every step of the block, via MXU matmuls
        # on an in-kernel one-hot (iota compare).  Chunked to bound the one-hot temp.
        wih = wih_ref[...]
        for c0 in range(0, TILE_T, CHUNK_T):
            ct = min(CHUNK_T, TILE_T - c0)
            r = resp_ref[c0:c0 + ct, :, :]                                   # (ct, TILE_B, 1)
            iota = lax.broadcasted_iota(jnp.int32, (ct, TILE_B, IN_pad), 2)
            onehot = jnp.where(r == iota, 1.0, 0.0)                          # f32 one-hot
            oh2 = onehot.reshape(ct * TILE_B, IN_pad).astype(jnp.bfloat16)
            xw = jnp.dot(oh2, wih, preferred_element_type=jnp.float32)       # (ct*TILE_B, H_pad)
            xh_scr[c0:c0 + ct, :, :] = xw.reshape(ct, TILE_B, H_pad)

        # ---- Serial recurrence: h = tanh(xw + h @ W_hh^T).
        # Hidden states overwrite the xw slab in place (xw[s] is dead after step s).
        whh = whh_ref[...]

        def step(s, h):
            xw_s = xh_scr[s]                                                 # (TILE_B, H_pad) f32
            h_new = jnp.tanh(
                xw_s + jnp.dot(h.astype(jnp.bfloat16), whh,
                               preferred_element_type=jnp.float32))
            if needs_t_mask:
                t_abs = t_blk * TILE_T + s
                h_new = jnp.where(t_abs < T_real, h_new, h)                  # freeze padded steps
            xh_scr[s] = h_new
            return h_new

        h_final = lax.fori_loop(0, TILE_T, step, h_scr[...], unroll=unroll)
        h_scr[...] = h_final

        # ---- Readout (off the serial chain): one big MXU matmul over the whole block,
        # then store batch-major (no host-side output transpose).
        hs2 = xh_scr[...].reshape(TILE_T * TILE_B, H_pad).astype(jnp.bfloat16)
        logits = jnp.dot(hs2, wfc_ref[...], preferred_element_type=jnp.float32)
        y3 = jax.nn.sigmoid(logits + bfc_ref[...]).reshape(TILE_T, TILE_B, K_pad)
        for t in range(TILE_T):                                              # static unroll
            out_ref[:, t, :] = y3[t]

        @pl.when(t_blk == pl.num_programs(1) - 1)
        def _():
            hn_ref[...] = h_final

    return kernel


def dkt_forward(responses, params, ku_num, hidden_num):
    """responses: int32 [B, T] in [0, 2*ku_num). Returns (output [B,T,K], hn [1,B,H])."""
    B, T = responses.shape
    K, H = ku_num, hidden_num
    IN = 2 * K

    # ---- Tiling: lane-dense (128) feature dims, sublane-multiple (8) batch/time.
    B_pad = _round_up(B, 8)
    TILE_B = B_pad if B_pad <= 128 else 128
    B_pad = _round_up(B_pad, TILE_B)
    NB = B_pad // TILE_B

    H_pad = _round_up(H, 128)
    K_pad = _round_up(K, 128)
    IN_pad = _round_up(IN, 128)

    # Bigger time blocks amortize per-grid-step overhead; shrink when the f32
    # output block (TILE_B, TILE_T, K_pad) gets expensive (VMEM budget, v7x 64 MiB).
    t_cap = 64 if K_pad <= 256 else (32 if K_pad <= 768 else 16)
    TILE_T = min(_round_up(T, 8), t_cap)
    T_pad = _round_up(T, TILE_T)
    NT = T_pad // TILE_T

    unroll = True if TILE_T <= 32 else 8
    # Prologue one-hot chunk: keep the (chunk*TILE_B, IN_pad) f32 temp <= ~2 MiB.
    CHUNK_T = max(1, min(TILE_T, (2 << 20) // max(1, TILE_B * IN_pad * 4)))

    # ---- Host-side operand prep (no one-hot tensor in HBM).
    # Responses go in time-major with a trailing unit dim so the kernel's one-hot
    # compare is a pure lane-broadcast (batch ends up in sublanes, classes in lanes).
    resp_tm = jnp.zeros((T_pad, B_pad), jnp.int32)
    resp_tm = resp_tm.at[:T, :B].set(jnp.transpose(responses.astype(jnp.int32), (1, 0)))
    resp_tm = resp_tm[..., None]                                   # (T_pad, B_pad, 1)

    def pad2(a, r, c, dtype):
        out = jnp.zeros((r, c), jnp.float32)
        out = out.at[:a.shape[0], :a.shape[1]].set(a.astype(jnp.float32))
        return out.astype(dtype)

    b_rnn = (params["b_ih"] + params["b_hh"]).reshape(1, H)
    wih_b = pad2(params["w_ih"].T + b_rnn, IN_pad, H_pad, jnp.bfloat16)   # W_ih^T + RNN bias
    whh_t = pad2(params["w_hh"].T, H_pad, H_pad, jnp.bfloat16)
    wfc_t = pad2(params["w_fc"].T, H_pad, K_pad, jnp.bfloat16)
    bfc_p = pad2(params["b_fc"].reshape(1, K), 1, K_pad, jnp.float32)

    kernel = _make_dkt_kernel(T, TILE_T, TILE_B, IN_pad, H_pad, K_pad, CHUNK_T, unroll)

    # ---- Explicit VMEM budget (double-buffered blocks + weights + scratch + temps).
    f32b, bf16b = 4, 2
    resp_blk = TILE_T * TILE_B * 128 * f32b          # trailing-1 int32 block pads lanes to 128
    out_blk = TILE_B * TILE_T * K_pad * f32b
    hn_blk = TILE_B * H_pad * f32b
    weights = (IN_pad * H_pad + H_pad * H_pad + H_pad * K_pad) * bf16b + K_pad * f32b
    scratch = (TILE_T * TILE_B * H_pad + TILE_B * H_pad) * f32b
    temps = (CHUNK_T * TILE_B * IN_pad * (f32b + bf16b)
             + TILE_T * TILE_B * H_pad * bf16b
             + TILE_T * TILE_B * K_pad * f32b)
    est = 2 * (resp_blk + out_blk + hn_blk + weights) + scratch + temps
    vmem_limit = int(min(max(2 * est, 32 * 1024 * 1024), 64 * 1024 * 1024))

    out_pad, hn_pad = pl.pallas_call(
        kernel,
        out_shape=(
            jax.ShapeDtypeStruct((B_pad, T_pad, K_pad), jnp.float32),
            jax.ShapeDtypeStruct((B_pad, H_pad), jnp.float32),
        ),
        grid_spec=pltpu.PrefetchScalarGridSpec(
            num_scalar_prefetch=0,
            grid=(NB, NT),
            in_specs=[
                pl.BlockSpec((TILE_T, TILE_B, 1), lambda b, t: (t, b, 0)),   # responses (VMEM)
                pl.BlockSpec((IN_pad, H_pad), lambda b, t: (0, 0)),          # W_ih^T + bias
                pl.BlockSpec((H_pad, H_pad), lambda b, t: (0, 0)),           # W_hh^T
                pl.BlockSpec((H_pad, K_pad), lambda b, t: (0, 0)),           # W_fc^T
                pl.BlockSpec((1, K_pad), lambda b, t: (0, 0)),               # b_fc
            ],
            out_specs=[
                pl.BlockSpec((TILE_B, TILE_T, K_pad), lambda b, t: (b, t, 0)),
                pl.BlockSpec((TILE_B, H_pad), lambda b, t: (b, 0)),
            ],
            scratch_shapes=[
                pltpu.VMEM((TILE_B, H_pad), jnp.float32),                    # h carry
                pltpu.VMEM((TILE_T, TILE_B, H_pad), jnp.float32),            # xw / h slab
            ],
        ),
        compiler_params=pltpu.CompilerParams(
            dimension_semantics=("parallel", "arbitrary"),                   # batch ∥, time seq.
            vmem_limit_bytes=vmem_limit,
        ),
    )(resp_tm, wih_b, whh_t, wfc_t, bfc_p)

    output = out_pad[:B, :T, :K]          # already batch-major: no host transpose
    hn = hn_pad[:B, :H][None]             # [1, B, H]
    return output, hn


def init_params(key, ku_num, hidden_num):
    """Deterministic init matching PyTorch shapes (nn.RNN + nn.Linear), U(-1/sqrt(H), 1/sqrt(H))."""
    K, H = ku_num, hidden_num
    IN = 2 * K
    bound = 1.0 / jnp.sqrt(jnp.float32(H))
    ks = jax.random.split(key, 6)
    u = lambda k, shape: jax.random.uniform(k, shape, jnp.float32, -bound, bound)
    return {
        "w_ih": u(ks[0], (H, IN)),   # nn.RNN weight_ih_l0
        "w_hh": u(ks[1], (H, H)),    # nn.RNN weight_hh_l0
        "b_ih": u(ks[2], (H,)),
        "b_hh": u(ks[3], (H,)),
        "w_fc": u(ks[4], (K, H)),    # nn.Linear weight
        "b_fc": u(ks[5], (K,)),
    }


def _reference(responses, params, ku_num, hidden_num):
    """Pure-JAX f32 reference of the PyTorch forward, for sanity check."""
    x = jax.nn.one_hot(responses, 2 * ku_num, dtype=jnp.float32)   # [B,T,2K]
    B, T, _ = x.shape
    h = jnp.zeros((B, hidden_num), jnp.float32)

    def step(h, xt):
        h = jnp.tanh(xt @ params["w_ih"].T + params["b_ih"]
                     + h @ params["w_hh"].T + params["b_hh"])
        return h, h

    hT, hs = jax.lax.scan(step, h, jnp.transpose(x, (1, 0, 2)))
    out = jax.nn.sigmoid(hs @ params["w_fc"].T + params["b_fc"])   # [T,B,K]
    return jnp.transpose(out, (1, 0, 2)), hT[None]


if __name__ == "__main__":
    ku_num = 16       # -> output_dim 16, rnn input dim 32
    hidden_num = 32
    B, T = 4, 8

    key = jax.random.PRNGKey(0)
    pkey, rkey = jax.random.split(key)
    params = init_params(pkey, ku_num, hidden_num)
    responses = jax.random.randint(rkey, (B, T), 0, 2 * ku_num, dtype=jnp.int32)

    out, hn = jax.block_until_ready(dkt_forward(responses, params, ku_num, hidden_num))

    ref_out, ref_hn = _reference(responses, params, ku_num, hidden_num)
    assert out.shape == (B, T, ku_num) and hn.shape == (1, B, hidden_num)
    # bf16 weights on the MXU (f32 accumulate) -> relaxed tolerance vs the f32 reference.
    assert jnp.allclose(out, ref_out, atol=5e-2), "output mismatch"
    assert jnp.allclose(hn, ref_hn, atol=5e-2), "hn mismatch"

    # TODO(synk): add_embedding_layer=True path (nn.Embedding + embedding dropout) and
    # sequence_mask are not exercised here (defaults: one-hot, dropout=0, mask=None).
    print("KERNEL_OK")
</pallas_src>

<mosaic_0001>
module attributes {stable_mosaic.version = 11 : i64} {
  func.func @kernel(%arg0: i32, %arg1: i32, %arg2: memref<8x8x1xi32, #tpu.memory_space<vmem>>, %arg3: memref<128x128xbf16, #tpu.memory_space<vmem>>, %arg4: memref<128x128xbf16, #tpu.memory_space<vmem>>, %arg5: memref<128x128xbf16, #tpu.memory_space<vmem>>, %arg6: memref<1x128xf32, #tpu.memory_space<vmem>>, %arg7: memref<8x8x128xf32, #tpu.memory_space<vmem>>, %arg8: memref<8x128xf32, #tpu.memory_space<vmem>>, %arg9: memref<8x128xf32, #tpu.memory_space<vmem>>, %arg10: memref<8x8x128xf32, #tpu.memory_space<vmem>>) attributes {dimension_semantics = [#tpu.dimension_semantics<parallel>, #tpu.dimension_semantics<arbitrary>], iteration_bounds = array<i64: 1, 1>, scalar_prefetch = 0 : i64, scratch_operands = 2 : i64, tpu.core_type = #tpu.core_type<tc>, window_params = [{transform_indices = @transform_0, window_bounds = array<i64: 8, 8, 1>}, {pipeline_mode = #tpu.pipeline_mode<synchronous>, transform_indices = @transform_1, window_bounds = array<i64: 128, 128>}, {pipeline_mode = #tpu.pipeline_mode<synchronous>, transform_indices = @transform_2, window_bounds = array<i64: 128, 128>}, {pipeline_mode = #tpu.pipeline_mode<synchronous>, transform_indices = @transform_3, window_bounds = array<i64: 128, 128>}, {pipeline_mode = #tpu.pipeline_mode<synchronous>, transform_indices = @transform_4, window_bounds = array<i64: 1, 128>}, {transform_indices = @transform_5, window_bounds = array<i64: 8, 8, 128>}, {transform_indices = @transform_6, window_bounds = array<i64: 8, 128>}]} {
    %c0_i32 = arith.constant 0 : i32
    %0 = arith.cmpi eq, %arg1, %c0_i32 : i32
    %1 = arith.extui %0 : i1 to i32
    %c0_i32_0 = arith.constant 0 : i32
    %2 = arith.cmpi ne, %1, %c0_i32_0 : i32
    scf.if %2 {
      %cst_85 = arith.constant 0.000000e+00 : f32
      %164 = vector.broadcast %cst_85 : f32 to vector<8x128xf32>
      %c0_86 = arith.constant 0 : index
      %c0_87 = arith.constant 0 : index
      %165 = vector.load %arg9[%c0_86, %c0_87] : memref<8x128xf32, #tpu.memory_space<vmem>>, vector<8x128xf32>
      tpu.vector_store %arg9[%c0_86, %c0_87], %164 {strides = array<i32>} : memref<8x128xf32, #tpu.memory_space<vmem>>, vector<8x128xf32>,
    } else {
    }
    %c0 = arith.constant 0 : index
    %c0_1 = arith.constant 0 : index
    %3 = vector.load %arg3[%c0, %c0_1] : memref<128x128xbf16, #tpu.memory_space<vmem>>, vector<128x128xbf16>
    %c0_2 = arith.constant 0 : index
    %c0_3 = arith.constant 0 : index
    %c0_4 = arith.constant 0 : index
    %4 = vector.load %arg2[%c0_2, %c0_3, %c0_4] : memref<8x8x1xi32, #tpu.memory_space<vmem>>, vector<8x8x1xi32>
    %5 = tpu.iota {dimensions = array<i32: 2>} : vector<8x8x128xi32>
    %6 = vector.broadcast %4 : vector<8x8x1xi32> to vector<8x8x128xi32>
    %7 = arith.cmpi eq, %6, %5 : vector<8x8x128xi32>
    %cst = arith.constant 1.000000e+00 : f32
    %cst_5 = arith.constant 0.000000e+00 : f32
    %8 = vector.broadcast %cst : f32 to vector<8x8x128xf32>
    %9 = vector.broadcast %cst_5 : f32 to vector<8x8x128xf32>
    %10 = arith.select %7, %8, %9 : vector<8x8x128xi1>, vector<8x8x128xf32>
    %11 = vector.shape_cast %10 : vector<8x8x128xf32> to vector<64x128xf32>
    %12 = arith.truncf %11 : vector<64x128xf32> to vector<64x128xbf16>
    %cst_6 = arith.constant dense<0.000000e+00> : vector<64x128xf32>
    %13 = tpu.matmul %12, %3, %cst_6 {dimension_numbers = #tpu.dot_dimension_numbers<[1], [0], [0], [1], [0, 0, 1, 1], [], []>} : vector<64x128xbf16>, vector<128x128xbf16>, vector<64x128xf32> -> vector<64x128xf32>
    %14 = vector.shape_cast %13 : vector<64x128xf32> to vector<8x8x128xf32>
    %c0_7 = arith.constant 0 : index
    %c0_8 = arith.constant 0 : index
    %c0_9 = arith.constant 0 : index
    %15 = vector.load %arg10[%c0_7, %c0_8, %c0_9] : memref<8x8x128xf32, #tpu.memory_space<vmem>>, vector<8x8x128xf32>
    tpu.vector_store %arg10[%c0_7, %c0_8, %c0_9], %14 {strides = array<i32>} : memref<8x8x128xf32, #tpu.memory_space<vmem>>, vector<8x8x128xf32>,
    %c0_10 = arith.constant 0 : index
    %c0_11 = arith.constant 0 : index
    %16 = vector.load %arg4[%c0_10, %c0_11] : memref<128x128xbf16, #tpu.memory_space<vmem>>, vector<128x128xbf16>
    %c0_12 = arith.constant 0 : index
    %c0_13 = arith.constant 0 : index
    %17 = vector.load %arg9[%c0_12, %c0_13] : memref<8x128xf32, #tpu.memory_space<vmem>>, vector<8x128xf32>
    %c0_i32_14 = arith.constant 0 : i32
    %18 = arith.index_cast %c0_i32_14 : i32 to index
    %c0_15 = arith.constant 0 : index
    %c0_16 = arith.constant 0 : index
    %19 = vector.load %arg10[%18, %c0_15, %c0_16] : memref<8x8x128xf32, #tpu.memory_space<vmem>>, vector<1x8x128xf32>
    %20 = vector.shape_cast %19 : vector<1x8x128xf32> to vector<8x128xf32>
    %21 = arith.truncf %17 : vector<8x128xf32> to vector<8x128xbf16>
    %cst_17 = arith.constant dense<0.000000e+00> : vector<8x128xf32>
    %22 = tpu.matmul %21, %16, %cst_17 {dimension_numbers = #tpu.dot_dimension_numbers<[1], [0], [0], [1], [0, 0, 1, 1], [], []>} : vector<8x128xbf16>, vector<128x128xbf16>, vector<8x128xf32> -> vector<8x128xf32>
    %23 = arith.addf %20, %22 : vector<8x128xf32>
    %24 = math.tanh %23 : vector<8x128xf32>
    %25 = arith.index_cast %c0_i32_14 : i32 to index
    %c0_18 = arith.constant 0 : index
    %c0_19 = arith.constant 0 : index
    %26 = vector.load %arg10[%25, %c0_18, %c0_19] : memref<8x8x128xf32, #tpu.memory_space<vmem>>, vector<1x8x128xf32>
    %27 = vector.shape_cast %26 : vector<1x8x128xf32> to vector<8x128xf32>
    %28 = vector.shape_cast %24 : vector<8x128xf32> to vector<1x8x128xf32>
    tpu.vector_store %arg10[%25, %c0_18, %c0_19], %28 {strides = array<i32>} : memref<8x8x128xf32, #tpu.memory_space<vmem>>, vector<1x8x128xf32>,
    %c1_i32 = arith.constant 1 : i32
    %29 = arith.index_cast %c1_i32 : i32 to index
    %c0_20 = arith.constant 0 : index
    %c0_21 = arith.constant 0 : index
    %30 = vector.load %arg10[%29, %c0_20, %c0_21] : memref<8x8x128xf32, #tpu.memory_space<vmem>>, vector<1x8x128xf32>
    %31 = vector.shape_cast %30 : vector<1x8x128xf32> to vector<8x128xf32>
    %32 = arith.truncf %24 : vector<8x128xf32> to vector<8x128xbf16>
    %cst_22 = arith.constant dense<0.000000e+00> : vector<8x128xf32>
    %33 = tpu.matmul %32, %16, %cst_22 {dimension_numbers = #tpu.dot_dimension_numbers<[1], [0], [0], [1], [0, 0, 1, 1], [], []>} : vector<8x128xbf16>, vector<128x128xbf16>, vector<8x128xf32> -> vector<8x128xf32>
    %34 = arith.addf %31, %33 : vector<8x128xf32>
    %35 = math.tanh %34 : vector<8x128xf32>
    %36 = arith.index_cast %c1_i32 : i32 to index
    %c0_23 = arith.constant 0 : index
    %c0_24 = arith.constant 0 : index
    %37 = vector.load %arg10[%36, %c0_23, %c0_24] : memref<8x8x128xf32, #tpu.memory_space<vmem>>, vector<1x8x128xf32>
    %38 = vector.shape_cast %37 : vector<1x8x128xf32> to vector<8x128xf32>
    %39 = vector.shape_cast %35 : vector<8x128xf32> to vector<1x8x128xf32>
    tpu.vector_store %arg10[%36, %c0_23, %c0_24], %39 {strides = array<i32>} : memref<8x8x128xf32, #tpu.memory_space<vmem>>, vector<1x8x128xf32>,
    %c2_i32 = arith.constant 2 : i32
    %40 = arith.index_cast %c2_i32 : i32 to index
    %c0_25 = arith.constant 0 : index
    %c0_26 = arith.constant 0 : index
    %41 = vector.load %arg10[%40, %c0_25, %c0_26] : memref<8x8x128xf32, #tpu.memory_space<vmem>>, vector<1x8x128xf32>
    %42 = vector.shape_cast %41 : vector<1x8x128xf32> to vector<8x128xf32>
    %43 = arith.truncf %35 : vector<8x128xf32> to vector<8x128xbf16>
    %cst_27 = arith.constant dense<0.000000e+00> : vector<8x128xf32>
    %44 = tpu.matmul %43, %16, %cst_27 {dimension_numbers = #tpu.dot_dimension_numbers<[1], [0], [0], [1], [0, 0, 1, 1], [], []>} : vector<8x128xbf16>, vector<128x128xbf16>, vector<8x128xf32> -> vector<8x128xf32>
    %45 = arith.addf %42, %44 : vector<8x128xf32>
    %46 = math.tanh %45 : vector<8x128xf32>
    %47 = arith.index_cast %c2_i32 : i32 to index
    %c0_28 = arith.constant 0 : index
    %c0_29 = arith.constant 0 : index
    %48 = vector.load %arg10[%47, %c0_28, %c0_29] : memref<8x8x128xf32, #tpu.memory_space<vmem>>, vector<1x8x128xf32>
    %49 = vector.shape_cast %48 : vector<1x8x128xf32> to vector<8x128xf32>
    %50 = vector.shape_cast %46 : vector<8x128xf32> to vector<1x8x128xf32>
    tpu.vector_store %arg10[%47, %c0_28, %c0_29], %50 {strides = array<i32>} : memref<8x8x128xf32, #tpu.memory_space<vmem>>, vector<1x8x128xf32>,
    %c3_i32 = arith.constant 3 : i32
    %51 = arith.index_cast %c3_i32 : i32 to index
    %c0_30 = arith.constant 0 : index
    %c0_31 = arith.constant 0 : index
    %52 = vector.load %arg10[%51, %c0_30, %c0_31] : memref<8x8x128xf32, #tpu.memory_space<vmem>>, vector<1x8x128xf32>
    %53 = vector.shape_cast %52 : vector<1x8x128xf32> to vector<8x128xf32>
    %54 = arith.truncf %46 : vector<8x128xf32> to vector<8x128xbf16>
    %cst_32 = arith.constant dense<0.000000e+00> : vector<8x128xf32>
    %55 = tpu.matmul %54, %16, %cst_32 {dimension_numbers = #tpu.dot_dimension_numbers<[1], [0], [0], [1], [0, 0, 1, 1], [], []>} : vector<8x128xbf16>, vector<128x128xbf16>, vector<8x128xf32> -> vector<8x128xf32>
    %56 = arith.addf %53, %55 : vector<8x128xf32>
    %57 = math.tanh %56 : vector<8x128xf32>
    %58 = arith.index_cast %c3_i32 : i32 to index
    %c0_33 = arith.constant 0 : index
    %c0_34 = arith.constant 0 : index
    %59 = vector.load %arg10[%58, %c0_33, %c0_34] : memref<8x8x128xf32, #tpu.memory_space<vmem>>, vector<1x8x128xf32>
    %60 = vector.shape_cast %59 : vector<1x8x128xf32> to vector<8x128xf32>
    %61 = vector.shape_cast %57 : vector<8x128xf32> to vector<1x8x128xf32>
    tpu.vector_store %arg10[%58, %c0_33, %c0_34], %61 {strides = array<i32>} : memref<8x8x128xf32, #tpu.memory_space<vmem>>, vector<1x8x128xf32>,
    %c4_i32 = arith.constant 4 : i32
    %62 = arith.index_cast %c4_i32 : i32 to index
    %c0_35 = arith.constant 0 : index
    %c0_36 = arith.constant 0 : index
    %63 = vector.load %arg10[%62, %c0_35, %c0_36] : memref<8x8x128xf32, #tpu.memory_space<vmem>>, vector<1x8x128xf32>
    %64 = vector.shape_cast %63 : vector<1x8x128xf32> to vector<8x128xf32>
    %65 = arith.truncf %57 : vector<8x128xf32> to vector<8x128xbf16>
    %cst_37 = arith.constant dense<0.000000e+00> : vector<8x128xf32>
    %66 = tpu.matmul %65, %16, %cst_37 {dimension_numbers = #tpu.dot_dimension_numbers<[1], [0], [0], [1], [0, 0, 1, 1], [], []>} : vector<8x128xbf16>, vector<128x128xbf16>, vector<8x128xf32> -> vector<8x128xf32>
    %67 = arith.addf %64, %66 : vector<8x128xf32>
    %68 = math.tanh %67 : vector<8x128xf32>
    %69 = arith.index_cast %c4_i32 : i32 to index
    %c0_38 = arith.constant 0 : index
    %c0_39 = arith.constant 0 : index
    %70 = vector.load %arg10[%69, %c0_38, %c0_39] : memref<8x8x128xf32, #tpu.memory_space<vmem>>, vector<1x8x128xf32>
    %71 = vector.shape_cast %70 : vector<1x8x128xf32> to vector<8x128xf32>
    %72 = vector.shape_cast %68 : vector<8x128xf32> to vector<1x8x128xf32>
    tpu.vector_store %arg10[%69, %c0_38, %c0_39], %72 {strides = array<i32>} : memref<8x8x128xf32, #tpu.memory_space<vmem>>, vector<1x8x128xf32>,
    %c5_i32 = arith.constant 5 : i32
    %73 = arith.index_cast %c5_i32 : i32 to index
    %c0_40 = arith.constant 0 : index
    %c0_41 = arith.constant 0 : index
    %74 = vector.load %arg10[%73, %c0_40, %c0_41] : memref<8x8x128xf32, #tpu.memory_space<vmem>>, vector<1x8x128xf32>
    %75 = vector.shape_cast %74 : vector<1x8x128xf32> to vector<8x128xf32>
    %76 = arith.truncf %68 : vector<8x128xf32> to vector<8x128xbf16>
    %cst_42 = arith.constant dense<0.000000e+00> : vector<8x128xf32>
    %77 = tpu.matmul %76, %16, %cst_42 {dimension_numbers = #tpu.dot_dimension_numbers<[1], [0], [0], [1], [0, 0, 1, 1], [], []>} : vector<8x128xbf16>, vector<128x128xbf16>, vector<8x128xf32> -> vector<8x128xf32>
    %78 = arith.addf %75, %77 : vector<8x128xf32>
    %79 = math.tanh %78 : vector<8x128xf32>
    %80 = arith.index_cast %c5_i32 : i32 to index
    %c0_43 = arith.constant 0 : index
    %c0_44 = arith.constant 0 : index
    %81 = vector.load %arg10[%80, %c0_43, %c0_44] : memref<8x8x128xf32, #tpu.memory_space<vmem>>, vector<1x8x128xf32>
    %82 = vector.shape_cast %81 : vector<1x8x128xf32> to vector<8x128xf32>
    %83 = vector.shape_cast %79 : vector<8x128xf32> to vector<1x8x128xf32>
    tpu.vector_store %arg10[%80, %c0_43, %c0_44], %83 {strides = array<i32>} : memref<8x8x128xf32, #tpu.memory_space<vmem>>, vector<1x8x128xf32>,
    %c6_i32 = arith.constant 6 : i32
    %84 = arith.index_cast %c6_i32 : i32 to index
    %c0_45 = arith.constant 0 : index
    %c0_46 = arith.constant 0 : index
    %85 = vector.load %arg10[%84, %c0_45, %c0_46] : memref<8x8x128xf32, #tpu.memory_space<vmem>>, vector<1x8x128xf32>
    %86 = vector.shape_cast %85 : vector<1x8x128xf32> to vector<8x128xf32>
    %87 = arith.truncf %79 : vector<8x128xf32> to vector<8x128xbf16>
    %cst_47 = arith.constant dense<0.000000e+00> : vector<8x128xf32>
    %88 = tpu.matmul %87, %16, %cst_47 {dimension_numbers = #tpu.dot_dimension_numbers<[1], [0], [0], [1], [0, 0, 1, 1], [], []>} : vector<8x128xbf16>, vector<128x128xbf16>, vector<8x128xf32> -> vector<8x128xf32>
    %89 = arith.addf %86, %88 : vector<8x128xf32>
    %90 = math.tanh %89 : vector<8x128xf32>
    %91 = arith.index_cast %c6_i32 : i32 to index
    %c0_48 = arith.constant 0 : index
    %c0_49 = arith.constant 0 : index
    %92 = vector.load %arg10[%91, %c0_48, %c0_49] : memref<8x8x128xf32, #tpu.memory_space<vmem>>, vector<1x8x128xf32>
    %93 = vector.shape_cast %92 : vector<1x8x128xf32> to vector<8x128xf32>
    %94 = vector.shape_cast %90 : vector<8x128xf32> to vector<1x8x128xf32>
    tpu.vector_store %arg10[%91, %c0_48, %c0_49], %94 {strides = array<i32>} : memref<8x8x128xf32, #tpu.memory_space<vmem>>, vector<1x8x128xf32>,
    %c7_i32 = arith.constant 7 : i32
    %95 = arith.index_cast %c7_i32 : i32 to index
    %c0_50 = arith.constant 0 : index
    %c0_51 = arith.constant 0 : index
    %96 = vector.load %arg10[%95, %c0_50, %c0_51] : memref<8x8x128xf32, #tpu.memory_space<vmem>>, vector<1x8x128xf32>
    %97 = vector.shape_cast %96 : vector<1x8x128xf32> to vector<8x128xf32>
    %98 = arith.truncf %90 : vector<8x128xf32> to vector<8x128xbf16>
    %cst_52 = arith.constant dense<0.000000e+00> : vector<8x128xf32>
    %99 = tpu.matmul %98, %16, %cst_52 {dimension_numbers = #tpu.dot_dimension_numbers<[1], [0], [0], [1], [0, 0, 1, 1], [], []>} : vector<8x128xbf16>, vector<128x128xbf16>, vector<8x128xf32> -> vector<8x128xf32>
    %100 = arith.addf %97, %99 : vector<8x128xf32>
    %101 = math.tanh %100 : vector<8x128xf32>
    %102 = arith.index_cast %c7_i32 : i32 to index
    %c0_53 = arith.constant 0 : index
    %c0_54 = arith.constant 0 : index
    %103 = vector.load %arg10[%102, %c0_53, %c0_54] : memref<8x8x128xf32, #tpu.memory_space<vmem>>, vector<1x8x128xf32>
    %104 = vector.shape_cast %103 : vector<1x8x128xf32> to vector<8x128xf32>
    %105 = vector.shape_cast %101 : vector<8x128xf32> to vector<1x8x128xf32>
    tpu.vector_store %arg10[%102, %c0_53, %c0_54], %105 {strides = array<i32>} : memref<8x8x128xf32, #tpu.memory_space<vmem>>, vector<1x8x128xf32>,
    %c8_i32 = arith.constant 8 : i32
    %c0_55 = arith.constant 0 : index
    %c0_56 = arith.constant 0 : index
    %106 = vector.load %arg9[%c0_55, %c0_56] : memref<8x128xf32, #tpu.memory_space<vmem>>, vector<8x128xf32>
    tpu.vector_store %arg9[%c0_55, %c0_56], %101 {strides = array<i32>} : memref<8x128xf32, #tpu.memory_space<vmem>>, vector<8x128xf32>,
    %c0_57 = arith.constant 0 : index
    %c0_58 = arith.constant 0 : index
    %c0_59 = arith.constant 0 : index
    %107 = vector.load %arg10[%c0_57, %c0_58, %c0_59] : memref<8x8x128xf32, #tpu.memory_space<vmem>>, vector<8x8x128xf32>
    %108 = vector.shape_cast %107 : vector<8x8x128xf32> to vector<64x128xf32>
    %109 = arith.truncf %108 : vector<64x128xf32> to vector<64x128xbf16>
    %c0_60 = arith.constant 0 : index
    %c0_61 = arith.constant 0 : index
    %110 = vector.load %arg5[%c0_60, %c0_61] : memref<128x128xbf16, #tpu.memory_space<vmem>>, vector<128x128xbf16>
    %cst_62 = arith.constant dense<0.000000e+00> : vector<64x128xf32>
    %111 = tpu.matmul %109, %110, %cst_62 {dimension_numbers = #tpu.dot_dimension_numbers<[1], [0], [0], [1], [0, 0, 1, 1], [], []>} : vector<64x128xbf16>, vector<128x128xbf16>, vector<64x128xf32> -> vector<64x128xf32>
    %c0_63 = arith.constant 0 : index
    %c0_64 = arith.constant 0 : index
    %112 = vector.load %arg6[%c0_63, %c0_64] : memref<1x128xf32, #tpu.memory_space<vmem>>, vector<1x128xf32>
    %113 = vector.broadcast %112 : vector<1x128xf32> to vector<64x128xf32>
    %114 = arith.addf %111, %113 : vector<64x128xf32>
    %115 = arith.negf %114 : vector<64x128xf32>
    %116 = math.exp %115 : vector<64x128xf32>
    %cst_65 = arith.constant 1.000000e+00 : f32
    %117 = vector.broadcast %cst_65 : f32 to vector<64x128xf32>
    %118 = arith.addf %117, %116 : vector<64x128xf32>
    %119 = arith.divf %117, %118 : vector<64x128xf32>
    %120 = vector.shape_cast %119 : vector<64x128xf32> to vector<8x8x128xf32>
    %121 = vector.extract_strided_slice %120 {offsets = [0, 0, 0], sizes = [1, 8, 128], strides = [1, 1, 1]} : vector<8x8x128xf32> to vector<1x8x128xf32>
    %122 = vector.shape_cast %121 : vector<1x8x128xf32> to vector<8x128xf32>
    %c0_66 = arith.constant 0 : index
    %c0_67 = arith.constant 0 : index
    %c0_68 = arith.constant 0 : index
    %123 = vector.load %arg7[%c0_66, %c0_67, %c0_68] : memref<8x8x128xf32, #tpu.memory_space<vmem>>, vector<8x1x128xf32>
    %124 = vector.shape_cast %123 : vector<8x1x128xf32> to vector<8x128xf32>
    %125 = vector.shape_cast %122 : vector<8x128xf32> to vector<8x1x128xf32>
    tpu.vector_store %arg7[%c0_66, %c0_67, %c0_68], %125 {strides = array<i32>} : memref<8x8x128xf32, #tpu.memory_space<vmem>>, vector<8x1x128xf32>,
    %126 = vector.extract_strided_slice %120 {offsets = [1, 0, 0], sizes = [1, 8, 128], strides = [1, 1, 1]} : vector<8x8x128xf32> to vector<1x8x128xf32>
    %127 = vector.shape_cast %126 : vector<1x8x128xf32> to vector<8x128xf32>
    %c0_69 = arith.constant 0 : index
    %c1 = arith.constant 1 : index
    %c0_70 = arith.constant 0 : index
    %128 = vector.load %arg7[%c0_69, %c1, %c0_70] : memref<8x8x128xf32, #tpu.memory_space<vmem>>, vector<8x1x128xf32>
    %129 = vector.shape_cast %128 : vector<8x1x128xf32> to vector<8x128xf32>
    %130 = vector.shape_cast %127 : vector<8x128xf32> to vector<8x1x128xf32>
    tpu.vector_store %arg7[%c0_69, %c1, %c0_70], %130 {strides = array<i32>} : memref<8x8x128xf32, #tpu.memory_space<vmem>>, vector<8x1x128xf32>,
    %131 = vector.extract_strided_slice %120 {offsets = [2, 0, 0], sizes = [1, 8, 128], strides = [1, 1, 1]} : vector<8x8x128xf32> to vector<1x8x128xf32>
    %132 = vector.shape_cast %131 : vector<1x8x128xf32> to vector<8x128xf32>
    %c0_71 = arith.constant 0 : index
    %c2 = arith.constant 2 : index
    %c0_72 = arith.constant 0 : index
    %133 = vector.load %arg7[%c0_71, %c2, %c0_72] : memref<8x8x128xf32, #tpu.memory_space<vmem>>, vector<8x1x128xf32>
    %134 = vector.shape_cast %133 : vector<8x1x128xf32> to vector<8x128xf32>
    %135 = vector.shape_cast %132 : vector<8x128xf32> to vector<8x1x128xf32>
    tpu.vector_store %arg7[%c0_71, %c2, %c0_72], %135 {strides = array<i32>} : memref<8x8x128xf32, #tpu.memory_space<vmem>>, vector<8x1x128xf32>,
    %136 = vector.extract_strided_slice %120 {offsets = [3, 0, 0], sizes = [1, 8, 128], strides = [1, 1, 1]} : vector<8x8x128xf32> to vector<1x8x128xf32>
    %137 = vector.shape_cast %136 : vector<1x8x128xf32> to vector<8x128xf32>
    %c0_73 = arith.constant 0 : index
    %c3 = arith.constant 3 : index
    %c0_74 = arith.constant 0 : index
    %138 = vector.load %arg7[%c0_73, %c3, %c0_74] : memref<8x8x128xf32, #tpu.memory_space<vmem>>, vector<8x1x128xf32>
    %139 = vector.shape_cast %138 : vector<8x1x128xf32> to vector<8x128xf32>
    %140 = vector.shape_cast %137 : vector<8x128xf32> to vector<8x1x128xf32>
    tpu.vector_store %arg7[%c0_73, %c3, %c0_74], %140 {strides = array<i32>} : memref<8x8x128xf32, #tpu.memory_space<vmem>>, vector<8x1x128xf32>,
    %141 = vector.extract_strided_slice %120 {offsets = [4, 0, 0], sizes = [1, 8, 128], strides = [1, 1, 1]} : vector<8x8x128xf32> to vector<1x8x128xf32>
    %142 = vector.shape_cast %141 : vector<1x8x128xf32> to vector<8x128xf32>
    %c0_75 = arith.constant 0 : index
    %c4 = arith.constant 4 : index
    %c0_76 = arith.constant 0 : index
    %143 = vector.load %arg7[%c0_75, %c4, %c0_76] : memref<8x8x128xf32, #tpu.memory_space<vmem>>, vector<8x1x128xf32>
    %144 = vector.shape_cast %143 : vector<8x1x128xf32> to vector<8x128xf32>
    %145 = vector.shape_cast %142 : vector<8x128xf32> to vector<8x1x128xf32>
    tpu.vector_store %arg7[%c0_75, %c4, %c0_76], %145 {strides = array<i32>} : memref<8x8x128xf32, #tpu.memory_space<vmem>>, vector<8x1x128xf32>,
    %146 = vector.extract_strided_slice %120 {offsets = [5, 0, 0], sizes = [1, 8, 128], strides = [1, 1, 1]} : vector<8x8x128xf32> to vector<1x8x128xf32>
    %147 = vector.shape_cast %146 : vector<1x8x128xf32> to vector<8x128xf32>
    %c0_77 = arith.constant 0 : index
    %c5 = arith.constant 5 : index
    %c0_78 = arith.constant 0 : index
    %148 = vector.load %arg7[%c0_77, %c5, %c0_78] : memref<8x8x128xf32, #tpu.memory_space<vmem>>, vector<8x1x128xf32>
    %149 = vector.shape_cast %148 : vector<8x1x128xf32> to vector<8x128xf32>
    %150 = vector.shape_cast %147 : vector<8x128xf32> to vector<8x1x128xf32>
    tpu.vector_store %arg7[%c0_77, %c5, %c0_78], %150 {strides = array<i32>} : memref<8x8x128xf32, #tpu.memory_space<vmem>>, vector<8x1x128xf32>,
    %151 = vector.extract_strided_slice %120 {offsets = [6, 0, 0], sizes = [1, 8, 128], strides = [1, 1, 1]} : vector<8x8x128xf32> to vector<1x8x128xf32>
    %152 = vector.shape_cast %151 : vector<1x8x128xf32> to vector<8x128xf32>
    %c0_79 = arith.constant 0 : index
    %c6 = arith.constant 6 : index
    %c0_80 = arith.constant 0 : index
    %153 = vector.load %arg7[%c0_79, %c6, %c0_80] : memref<8x8x128xf32, #tpu.memory_space<vmem>>, vector<8x1x128xf32>
    %154 = vector.shape_cast %153 : vector<8x1x128xf32> to vector<8x128xf32>
    %155 = vector.shape_cast %152 : vector<8x128xf32> to vector<8x1x128xf32>
    tpu.vector_store %arg7[%c0_79, %c6, %c0_80], %155 {strides = array<i32>} : memref<8x8x128xf32, #tpu.memory_space<vmem>>, vector<8x1x128xf32>,
    %156 = vector.extract_strided_slice %120 {offsets = [7, 0, 0], sizes = [1, 8, 128], strides = [1, 1, 1]} : vector<8x8x128xf32> to vector<1x8x128xf32>
    %157 = vector.shape_cast %156 : vector<1x8x128xf32> to vector<8x128xf32>
    %c0_81 = arith.constant 0 : index
    %c7 = arith.constant 7 : index
    %c0_82 = arith.constant 0 : index
    %158 = vector.load %arg7[%c0_81, %c7, %c0_82] : memref<8x8x128xf32, #tpu.memory_space<vmem>>, vector<8x1x128xf32>
    %159 = vector.shape_cast %158 : vector<8x1x128xf32> to vector<8x128xf32>
    %160 = vector.shape_cast %157 : vector<8x128xf32> to vector<8x1x128xf32>
    tpu.vector_store %arg7[%c0_81, %c7, %c0_82], %160 {strides = array<i32>} : memref<8x8x128xf32, #tpu.memory_space<vmem>>, vector<8x1x128xf32>,
    %c0_i32_83 = arith.constant 0 : i32
    %161 = arith.cmpi eq, %arg1, %c0_i32_83 : i32
    %162 = arith.extui %161 : i1 to i32
    %c0_i32_84 = arith.constant 0 : i32
    %163 = arith.cmpi ne, %162, %c0_i32_84 : i32
    scf.if %163 {
      %c0_85 = arith.constant 0 : index
      %c0_86 = arith.constant 0 : index
      %164 = vector.load %arg8[%c0_85, %c0_86] : memref<8x128xf32, #tpu.memory_space<vmem>>, vector<8x128xf32>
      tpu.vector_store %arg8[%c0_85, %c0_86], %101 {strides = array<i32>} : memref<8x128xf32, #tpu.memory_space<vmem>>, vector<8x128xf32>,
    } else {
    }
    return
  }
  func.func @transform_0(%arg0: i32, %arg1: i32) -> (i32, i32, i32) {
    %c0_i32 = arith.constant 0 : i32
    %c0_i32_0 = arith.constant 0 : i32
    return %arg1, %arg0, %c0_i32 : i32, i32, i32
  }
  func.func @transform_1(%arg0: i32, %arg1: i32) -> (i32, i32) {
    %c0_i32 = arith.constant 0 : i32
    %c0_i32_0 = arith.constant 0 : i32
    %c0_i32_1 = arith.constant 0 : i32
    return %c0_i32, %c0_i32_0 : i32, i32
  }
  func.func @transform_2(%arg0: i32, %arg1: i32) -> (i32, i32) {
    %c0_i32 = arith.constant 0 : i32
    %c0_i32_0 = arith.constant 0 : i32
    %c0_i32_1 = arith.constant 0 : i32
    return %c0_i32, %c0_i32_0 : i32, i32
  }
  func.func @transform_3(%arg0: i32, %arg1: i32) -> (i32, i32) {
    %c0_i32 = arith.constant 0 : i32
    %c0_i32_0 = arith.constant 0 : i32
    %c0_i32_1 = arith.constant 0 : i32
    return %c0_i32, %c0_i32_0 : i32, i32
  }
  func.func @transform_4(%arg0: i32, %arg1: i32) -> (i32, i32) {
    %c0_i32 = arith.constant 0 : i32
    %c0_i32_0 = arith.constant 0 : i32
    %c0_i32_1 = arith.constant 0 : i32
    return %c0_i32, %c0_i32_0 : i32, i32
  }
  func.func @transform_5(%arg0: i32, %arg1: i32) -> (i32, i32, i32) {
    %c0_i32 = arith.constant 0 : i32
    %c0_i32_0 = arith.constant 0 : i32
    return %arg0, %arg1, %c0_i32 : i32, i32, i32
  }
  func.func @transform_6(%arg0: i32, %arg1: i32) -> (i32, i32) {
    %c0_i32 = arith.constant 0 : i32
    %c0_i32_0 = arith.constant 0 : i32
    return %arg0, %c0_i32 : i32, i32
  }
}

</mosaic_0001>

<llo_original>
// kernel: tpu_custom_call.1
$region0: #{tpu_custom_call.1}
  #allocation0 [shape = 'u32[]', space=smem, size = 0x4, offset = 0x4, fixed_abs, tag = 'smem constant byte address 0x4 - core index']
  #allocation1 [shape = 'u32[144,128]{1,0:T(1,128)}', space=vmem, size = 0x12000, scoped, tag = 'internal scratch']
  #allocation2 [shape = 'f32[8,128]{1,0:T(8,128)}', space=vmem, size = 0x1000, scoped, tag = 'scratch operand']
  #allocation3 [shape = 'f32[8,8,128]{2,1,0:T(8,128)}', space=vmem, size = 0x8000, scoped, tag = 'scratch operand']
  %s0 = inlined_call_operand.vmem [shape: s32[8,8,1], index: 0, kind: input, shape index: {}]
  %s1 = inlined_call_operand.vmem [shape: bf16[128,128], index: 1, kind: input, shape index: {}]
  %s2 = inlined_call_operand.hbm [shape: bf16[128,128], index: 2, kind: input, shape index: {}]
  %s3 = inlined_call_operand.hbm [shape: bf16[128,128], index: 3, kind: input, shape index: {}]
  %s4 = inlined_call_operand.vmem [shape: f32[1,128], index: 4, kind: input, shape index: {}]
  %s5 = inlined_call_operand.hbm [shape: f32[8,8,128], index: 5, kind: output, shape index: {0}]
  %s6 = inlined_call_operand.hbm [shape: f32[8,128], index: 6, kind: output, shape index: {1}]
  %7 = xla_tuple %s5, %s6
  %s8 = sld [smem:[#allocation0]]
  $region54: #{tpu_custom_call.1} parent=0
    _
  %s10 = ssub.s32 1, %s8
  %s11 = scalar_select 0, %s10, %s8
  $region1: #{tpu_custom_call.1} parent=0
    #allocation4 [shape = 'u8[32768]{0}', space=vmem, size = 0x8000, scoped, tag = 'input window, operand 2, single buffered']
    #allocation5 [shape = 's32[1]{0}', space=sflag, size = 0x4, scoped, tag = 'scoped memory for tpu_custom_call.1']
    #allocation6 [shape = 's32[1]{0}', space=sflag, size = 0x4, scoped, tag = 'scoped memory for tpu_custom_call.1']
    #allocation7 [shape = 'u8[32768]{0}', space=vmem, size = 0x8000, scoped, tag = 'input window, operand 3, single buffered']
    #allocation8 [shape = 's32[1]{0}', space=sflag, size = 0x4, scoped, tag = 'scoped memory for tpu_custom_call.1']
    #allocation9 [shape = 'u8[32768]{0}', space=vmem, size = 0x8000, scoped, tag = 'output window, operand 0, single buffered']
    #allocation10 [shape = 'u8[4096]{0}', space=vmem, size = 0x1000, scoped, tag = 'output window, operand 1, single buffered']
    #allocation11 [shape = 's32[1]{0}', space=sflag, size = 0x4, scoped, tag = 'scoped memory for tpu_custom_call.1']
    %12 = vsyncpa [#allocation5], 0
    %13 = vsyncpa [#allocation8], 0
    %14 = vsyncpa [#allocation6], 0
    %15 = vsyncpa [#allocation11], 0
    // Predicated region
    $region2: #{tpu_custom_call.1} parent=1 // pred_check
      _
    $region3: #{tpu_custom_call.1} parent=1 // pred_check_branch
      %17 = sbr.rel (0) target = $region5
    $region4: #{tpu_custom_call.1} parent=1 // pred_region
      _
    $region5: #{tpu_custom_call.1} parent=1 // pred_fallthru
      _
    // Predicated region
    $region6: #{tpu_custom_call.1} parent=1 // pred_check
      _
    $region7: #{tpu_custom_call.1} parent=1 // pred_check_branch
      %19 = sbr.rel (0) target = $region9
    $region8: #{tpu_custom_call.1} parent=1 // pred_region
      _
    $region9: #{tpu_custom_call.1} parent=1 // pred_fallthru
      _
    // Predicated region
    $region10: #{tpu_custom_call.1} parent=1 // pred_check
      _
    $region11: #{tpu_custom_call.1} parent=1 // pred_check_branch
      %21 = sbr.rel (0) target = $region13
    $region12: #{tpu_custom_call.1} parent=1 // pred_region
      %s23 = ssub.s32 1024, 1024
      %24 = vsyncadd [#allocation5], %s23
      %s25 = sshll.u32 [#allocation4], 4
      %s26 = int_to_ptr.vmem [resolvable:$true] %s25
      %31 = dma.hbm_to_vmem [thread:$0]  %s2, 1024, %s26, [#allocation5], 64, 64, 4
    $region13: #{tpu_custom_call.1} parent=1 // pred_fallthru
      _
    // Predicated region
    $region14: #{tpu_custom_call.1} parent=1 // pred_check
      _
    $region15: #{tpu_custom_call.1} parent=1 // pred_check_branch
      %33 = sbr.rel (0) target = $region17
    $region16: #{tpu_custom_call.1} parent=1 // pred_region
      %s35 = ssub.s32 1024, 1024
      %36 = vsyncadd [#allocation8], %s35
      %s37 = sshll.u32 [#allocation7], 4
      %s38 = int_to_ptr.vmem [resolvable:$true] %s37
      %43 = dma.hbm_to_vmem [thread:$0]  %s3, 1024, %s38, [#allocation8], 64, 64, 4
    $region17: #{tpu_custom_call.1} parent=1 // pred_fallthru
      _
    // Predicated region
    $region18: #{tpu_custom_call.1} parent=1 // pred_check
      _
    $region19: #{tpu_custom_call.1} parent=1 // pred_check_branch
      %45 = sbr.rel (0) target = $region21
    $region20: #{tpu_custom_call.1} parent=1 // pred_region
      _
    $region21: #{tpu_custom_call.1} parent=1 // pred_fallthru
      _
    // Predicated region
    $region22: #{tpu_custom_call.1} parent=1 // pred_check
      _
    $region23: #{tpu_custom_call.1} parent=1 // pred_check_branch
      %47 = sbr.rel (0) target = $region25
    $region24: #{tpu_custom_call.1} parent=1 // pred_region
      %48 = dma.done [#allocation5], 1024
    $region25: #{tpu_custom_call.1} parent=1 // pred_fallthru
      _
    // Predicated region
    $region26: #{tpu_custom_call.1} parent=1 // pred_check
      _
    $region27: #{tpu_custom_call.1} parent=1 // pred_check_branch
      %50 = sbr.rel (0) target = $region29
    $region28: #{tpu_custom_call.1} parent=1 // pred_region
      %51 = dma.done [#allocation8], 1024
    $region29: #{tpu_custom_call.1} parent=1 // pred_fallthru
      _
    %p53 = scmp.eq.s32.totalorder 0, 0
    // Predicated region
    $region30: #{tpu_custom_call.1} parent=1 // pred_check
      %p54 = pneg %p53
    $region31: #{tpu_custom_call.1} parent=1 // pred_check_branch
      %56 = sbr.rel (%p54) target = $region33
    $region32: #{tpu_custom_call.1} parent=1 // pred_region
      %57 = vst [vmem:[#allocation2] sm:$0xff] 0.0
    $region33: #{tpu_custom_call.1} parent=1 // pred_fallthru
      _
    %v58 = vld [vmem:[%s1] sm:$0xf]
    %v59 = vld [vmem:[%s1 + $0x4] sm:$0xf]
    %v60 = vld [vmem:[%s1 + $0x8] sm:$0xf]
    %v61 = vld [vmem:[%s1 + $0xc] sm:$0xf]
    %v62 = vld [vmem:[%s1 + $0x10] sm:$0xf]
    %v63 = vld [vmem:[%s1 + $0x14] sm:$0xf]
    %v64 = vld [vmem:[%s1 + $0x18] sm:$0xf]
    %v65 = vld [vmem:[%s1 + $0x1c] sm:$0xf]
    %v66 = vld [vmem:[%s1 + $0x20] sm:$0xf]
    %v67 = vld [vmem:[%s1 + $0x24] sm:$0xf]
    %v68 = vld [vmem:[%s1 + $0x28] sm:$0xf]
    %v69 = vld [vmem:[%s1 + $0x2c] sm:$0xf]
    %v70 = vld [vmem:[%s1 + $0x30] sm:$0xf]
    %v71 = vld [vmem:[%s1 + $0x34] sm:$0xf]
    %v72 = vld [vmem:[%s1 + $0x38] sm:$0xf]
    %v73 = vld [vmem:[%s1 + $0x3c] sm:$0xf]
    %v74 = vld [vmem:[%s0] sm:$0xff]
    %v75 = vld [vmem:[%s0 + $0x8] sm:$0xff]
    %v76 = vld [vmem:[%s0 + $0x10] sm:$0xff]
    %v77 = vld [vmem:[%s0 + $0x18] sm:$0xff]
    %v78 = vld [vmem:[%s0 + $0x20] sm:$0xff]
    %v79 = vld [vmem:[%s0 + $0x28] sm:$0xff]
    %v80 = vld [vmem:[%s0 + $0x30] sm:$0xff]
    %v81 = vld [vmem:[%s0 + $0x38] sm:$0xff]
    %v82 = vlaneseq
    %v83 = vand.u32 %v82, 127
    %84 = vset.pattern.permute.xlu0 0
    %85 = vperm.xlu0 %84, %v74
    %v86 = vpop.permute.xlu0 %85
    %87 = vset.pattern.permute.xlu0 0
    %88 = vperm.xlu0 %87, %v75
    %v89 = vpop.permute.xlu0 %88
    %90 = vset.pattern.permute.xlu0 0
    %91 = vperm.xlu0 %90, %v76
    %v92 = vpop.permute.xlu0 %91
    %93 = vset.pattern.permute.xlu0 0
    %94 = vperm.xlu0 %93, %v77
    %v95 = vpop.permute.xlu0 %94
    %96 = vset.pattern.permute.xlu0 0
    %97 = vperm.xlu0 %96, %v78
    %v98 = vpop.permute.xlu0 %97
    %99 = vset.pattern.permute.xlu0 0
    %100 = vperm.xlu0 %99, %v79
    %v101 = vpop.permute.xlu0 %100
    %102 = vset.pattern.permute.xlu0 0
    %103 = vperm.xlu0 %102, %v80
    %v104 = vpop.permute.xlu0 %103
    %105 = vset.pattern.permute.xlu0 0
    %106 = vperm.xlu0 %105, %v81
    %v107 = vpop.permute.xlu0 %106
    %vm108 = vcmp.eq.s32.totalorder %v86, %v83
    %vm109 = vcmp.eq.s32.totalorder %v89, %v83
    %vm110 = vcmp.eq.s32.totalorder %v92, %v83
    %vm111 = vcmp.eq.s32.totalorder %v95, %v83
    %vm112 = vcmp.eq.s32.totalorder %v98, %v83
    %vm113 = vcmp.eq.s32.totalorder %v101, %v83
    %vm114 = vcmp.eq.s32.totalorder %v104, %v83
    %vm115 = vcmp.eq.s32.totalorder %v107, %v83
    %v116 = vsel %vm108, 1.0, 0.0
    %v117 = vsel %vm109, 1.0, 0.0
    %v118 = vsel %vm110, 1.0, 0.0
    %v119 = vsel %vm111, 1.0, 0.0
    %v120 = vsel %vm112, 1.0, 0.0
    %v121 = vsel %vm113, 1.0, 0.0
    %v122 = vsel %vm114, 1.0, 0.0
    %v123 = vsel %vm115, 1.0, 0.0
    %v124 = vpack.c.bf16 %v117, %v116
    %v125 = vpack.c.bf16 %v119, %v118
    %v126 = vpack.c.bf16 %v121, %v120
    %v127 = vpack.c.bf16 %v123, %v122
    %v144 = vunpack.c.l.b16 %v58
    %v145 = vunpack.c.l.b16 %v59
    %v146 = vunpack.c.l.b16 %v60
    %v147 = vunpack.c.l.b16 %v61
    %v148 = vunpack.c.l.b16 %v62
    %v149 = vunpack.c.l.b16 %v63
    %v150 = vunpack.c.l.b16 %v64
    %v151 = vunpack.c.l.b16 %v65
    %v152 = vunpack.c.l.b16 %v66
    %v153 = vunpack.c.l.b16 %v67
    %v154 = vunpack.c.l.b16 %v68
    %v155 = vunpack.c.l.b16 %v69
    %v156 = vunpack.c.l.b16 %v70
    %v157 = vunpack.c.l.b16 %v71
    %v158 = vunpack.c.l.b16 %v72
    %v159 = vunpack.c.l.b16 %v73
    %v160 = vpack.c.b16 %v145, %v144
    %v161 = vpack.c.b16 %v147, %v146
    %v162 = vpack.c.b16 %v149, %v148
    %v163 = vpack.c.b16 %v151, %v150
    %v164 = vpack.c.b16 %v153, %v152
    %v165 = vpack.c.b16 %v155, %v154
    %v166 = vpack.c.b16 %v157, %v156
    %v167 = vpack.c.b16 %v159, %v158
    %176 = vmatprep.subr.bf16.mxu0 0
    %177 = vmatpush1.bf16.msra.mxu0 %v160
    %178 = vmatprep.subr.bf16.mxu0 0
    %179 = vmatpush1.bf16.msra.mxu0 %v161
    %180 = vmatprep.subr.bf16.mxu0 0
    %181 = vmatpush1.bf16.msra.mxu0 %v162
    %182 = vmatprep.subr.bf16.mxu0 0
    %183 = vmatpush1.bf16.msra.mxu0 %v163
    %184 = vmatprep.subr.bf16.mxu0 0
    %185 = vmatpush1.bf16.msra.mxu0 %v164
    %186 = vmatprep.subr.bf16.mxu0 0
    %187 = vmatpush1.bf16.msra.mxu0 %v165
    %188 = vmatprep.subr.bf16.mxu0 0
    %189 = vmatpush1.bf16.msra.mxu0 %v166
    %190 = vmatprep.subr.bf16.mxu0 0
    %191 = vmatpush1.bf16.msra.mxu0 %v167
    %192 = vmatprep.subr.bf16.mxu0 0
    %193 = vmatpush1.bf16.msra.mxu0 0
    %194 = vmatprep.subr.bf16.mxu0 0
    %195 = vmatpush1.bf16.msra.mxu0 0
    %196 = vmatprep.subr.bf16.mxu0 0
    %197 = vmatpush1.bf16.msra.mxu0 0
    %198 = vmatprep.subr.bf16.mxu0 0
    %199 = vmatpush1.bf16.msra.mxu0 0
    %200 = vmatprep.subr.bf16.mxu0 0
    %201 = vmatpush1.bf16.msra.mxu0 0
    %202 = vmatprep.subr.bf16.mxu0 0
    %203 = vmatpush1.bf16.msra.mxu0 0
    %204 = vmatprep.subr.bf16.mxu0 0
    %205 = vmatpush1.bf16.msra.mxu0 0
    %206 = vmatprep.subr.bf16.mxu0 0
    %207 = vmatpush1.bf16.msra.mxu0 0
    %208 = vmatprep.mubr.bf16.mxu0 0
    %209 = vmatmul.mubr.bf16.gmra.mrb[0].mxu0 %v124
    %v210 = vpop.f32.mrb[0].mxu0
    %v211 = vadd.f32 0.0, %v210
    %v212 = vpop.f32.mrb[0].mxu0
    %v213 = vpop.f32.mrb[0].mxu0
    %v214 = vadd.f32 0.0, %v213
    %v215 = vpop.f32.mrb[0].mxu0
    %216 = vmatprep.mubr.bf16.mxu0 0
    %217 = vmatmul.mubr.bf16.gmra.mrb[0].mxu0 %v125
    %v218 = vpop.f32.mrb[0].mxu0
    %v219 = vadd.f32 0.0, %v218
    %v220 = vpop.f32.mrb[0].mxu0
    %v221 = vpop.f32.mrb[0].mxu0
    %v222 = vadd.f32 0.0, %v221
    %v223 = vpop.f32.mrb[0].mxu0
    %224 = vmatprep.mubr.bf16.mxu0 0
    %225 = vmatmul.mubr.bf16.gmra.mrb[0].mxu0 %v126
    %v226 = vpop.f32.mrb[0].mxu0
    %v227 = vadd.f32 0.0, %v226
    %v228 = vpop.f32.mrb[0].mxu0
    %v229 = vpop.f32.mrb[0].mxu0
    %v230 = vadd.f32 0.0, %v229
    %v231 = vpop.f32.mrb[0].mxu0
    %232 = vmatprep.mubr.bf16.mxu0 0
    %233 = vmatmul.mubr.bf16.gmra.mrb[0].mxu0 %v127
    %v234 = vpop.f32.mrb[0].mxu0
    %v235 = vadd.f32 0.0, %v234
    %v236 = vpop.f32.mrb[0].mxu0
    %v237 = vpop.f32.mrb[0].mxu0
    %v238 = vadd.f32 0.0, %v237
    %v239 = vpop.f32.mrb[0].mxu0
    %240 = vdwg.mxu0
    %241 = vst [vmem:[#allocation3] sm:$0xff] %v211
    %242 = vst [vmem:[#allocation3 + $0x8] sm:$0xff] %v214
    %243 = vst [vmem:[#allocation3 + $0x10] sm:$0xff] %v219
    %244 = vst [vmem:[#allocation3 + $0x18] sm:$0xff] %v222
    %245 = vst [vmem:[#allocation3 + $0x20] sm:$0xff] %v227
    %246 = vst [vmem:[#allocation3 + $0x28] sm:$0xff] %v230
    %247 = vst [vmem:[#allocation3 + $0x30] sm:$0xff] %v235
    %248 = vst [vmem:[#allocation3 + $0x38] sm:$0xff] %v238
    %v249 = vld [vmem:[#allocation4] sm:$0xf]
    %v250 = vld [vmem:[#allocation4 + $0x4] sm:$0xf]
    %v251 = vld [vmem:[#allocation4 + $0x8] sm:$0xf]
    %v252 = vld [vmem:[#allocation4 + $0xc] sm:$0xf]
    %v253 = vld [vmem:[#allocation4 + $0x10] sm:$0xf]
    %v254 = vld [vmem:[#allocation4 + $0x14] sm:$0xf]
    %v255 = vld [vmem:[#allocation4 + $0x18] sm:$0xf]
    %v256 = vld [vmem:[#allocation4 + $0x1c] sm:$0xf]
    %v257 = vld [vmem:[#allocation4 + $0x20] sm:$0xf]
    %v258 = vld [vmem:[#allocation4 + $0x24] sm:$0xf]
    %v259 = vld [vmem:[#allocation4 + $0x28] sm:$0xf]
    %v260 = vld [vmem:[#allocation4 + $0x2c] sm:$0xf]
    %v261 = vld [vmem:[#allocation4 + $0x30] sm:$0xf]
    %v262 = vld [vmem:[#allocation4 + $0x34] sm:$0xf]
    %v263 = vld [vmem:[#allocation4 + $0x38] sm:$0xf]
    %v264 = vld [vmem:[#allocation4 + $0x3c] sm:$0xf]
    %v265 = vld [vmem:[#allocation2] sm:$0xff]
    %v266 = vld [vmem:[#allocation3] sm:$0xff]
    %v267 = vpack.c.bf16 %v265, %v265
    %v284 = vunpack.c.l.b16 %v249
    %v285 = vunpack.c.l.b16 %v250
    %v286 = vunpack.c.l.b16 %v251
    %v287 = vunpack.c.l.b16 %v252
    %v288 = vunpack.c.l.b16 %v253
    %v289 = vunpack.c.l.b16 %v254
    %v290 = vunpack.c.l.b16 %v255
    %v291 = vunpack.c.l.b16 %v256
    %v292 = vunpack.c.l.b16 %v257
    %v293 = vunpack.c.l.b16 %v258
    %v294 = vunpack.c.l.b16 %v259
    %v295 = vunpack.c.l.b16 %v260
    %v296 = vunpack.c.l.b16 %v261
    %v297 = vunpack.c.l.b16 %v262
    %v298 = vunpack.c.l.b16 %v263
    %v299 = vunpack.c.l.b16 %v264
    %v300 = vpack.c.b16 %v285, %v284
    %v301 = vpack.c.b16 %v287, %v286
    %v302 = vpack.c.b16 %v289, %v288
    %v303 = vpack.c.b16 %v291, %v290
    %v304 = vpack.c.b16 %v293, %v292
    %v305 = vpack.c.b16 %v295, %v294
    %v306 = vpack.c.b16 %v297, %v296
    %v307 = vpack.c.b16 %v299, %v298
    %316 = vmatprep.subr.bf16.mxu0 0
    %317 = vmatpush1.bf16.msra.mxu0 %v300
    %318 = vmatprep.subr.bf16.mxu0 0
    %319 = vmatpush1.bf16.msra.mxu0 %v301
    %320 = vmatprep.subr.bf16.mxu0 0
    %321 = vmatpush1.bf16.msra.mxu0 %v302
    %322 = vmatprep.subr.bf16.mxu0 0
    %323 = vmatpush1.bf16.msra.mxu0 %v303
    %324 = vmatprep.subr.bf16.mxu0 0
    %325 = vmatpush1.bf16.msra.mxu0 %v304
    %326 = vmatprep.subr.bf16.mxu0 0
    %327 = vmatpush1.bf16.msra.mxu0 %v305
    %328 = vmatprep.subr.bf16.mxu0 0
    %329 = vmatpush1.bf16.msra.mxu0 %v306
    %330 = vmatprep.subr.bf16.mxu0 0
    %331 = vmatpush1.bf16.msra.mxu0 %v307
    %332 = vmatprep.subr.bf16.mxu0 0
    %333 = vmatpush1.bf16.msra.mxu0 0
    %334 = vmatprep.subr.bf16.mxu0 0
    %335 = vmatpush1.bf16.msra.mxu0 0
    %336 = vmatprep.subr.bf16.mxu0 0
    %337 = vmatpush1.bf16.msra.mxu0 0
    %338 = vmatprep.subr.bf16.mxu0 0
    %339 = vmatpush1.bf16.msra.mxu0 0
    %340 = vmatprep.subr.bf16.mxu0 0
    %341 = vmatpush1.bf16.msra.mxu0 0
    %342 = vmatprep.subr.bf16.mxu0 0
    %343 = vmatpush1.bf16.msra.mxu0 0
    %344 = vmatprep.subr.bf16.mxu0 0
    %345 = vmatpush1.bf16.msra.mxu0 0
    %346 = vmatprep.subr.bf16.mxu0 0
    %347 = vmatpush1.bf16.msra.mxu0 0
    %348 = vmatprep.mubr.bf16.mxu0 0
    %349 = vmatmul.mubr.bf16.gmra.mrb[0].mxu0 %v267
    %v350 = vpop.f32.mrb[0].mxu0
    %v351 = vadd.f32 0.0, %v350
    %v352 = vpop.f32.mrb[0].mxu0
    %v353 = vpop.f32.mrb[0].mxu0
    %v354 = vpop.f32.mrb[0].mxu0
    %355 = vdwg.mxu0
    %v356 = vadd.f32 %v266, %v351
    %v357 = vtanh.pop %v356
    %358 = vst [vmem:[#allocation3] sm:$0xff] %v357
    %s359 = scalar_lea.vmem [#allocation3], 8
    %v360 = vld [vmem:[%s359] sm:$0xff]
    %v361 = vpack.c.bf16 %v357, %v357
    %362 = vmatprep.subr.bf16.mxu0 0
    %363 = vmatpush1.bf16.msra.mxu0 %v300
    %364 = vmatprep.subr.bf16.mxu0 0
    %365 = vmatpush1.bf16.msra.mxu0 %v301
    %366 = vmatprep.subr.bf16.mxu0 0
    %367 = vmatpush1.bf16.msra.mxu0 %v302
    %368 = vmatprep.subr.bf16.mxu0 0
    %369 = vmatpush1.bf16.msra.mxu0 %v303
    %370 = vmatprep.subr.bf16.mxu0 0
    %371 = vmatpush1.bf16.msra.mxu0 %v304
    %372 = vmatprep.subr.bf16.mxu0 0
    %373 = vmatpush1.bf16.msra.mxu0 %v305
    %374 = vmatprep.subr.bf16.mxu0 0
    %375 = vmatpush1.bf16.msra.mxu0 %v306
    %376 = vmatprep.subr.bf16.mxu0 0
    %377 = vmatpush1.bf16.msra.mxu0 %v307
    %378 = vmatprep.subr.bf16.mxu0 0
    %379 = vmatpush1.bf16.msra.mxu0 0
    %380 = vmatprep.subr.bf16.mxu0 0
    %381 = vmatpush1.bf16.msra.mxu0 0
    %382 = vmatprep.subr.bf16.mxu0 0
    %383 = vmatpush1.bf16.msra.mxu0 0
    %384 = vmatprep.subr.bf16.mxu0 0
    %385 = vmatpush1.bf16.msra.mxu0 0
    %386 = vmatprep.subr.bf16.mxu0 0
    %387 = vmatpush1.bf16.msra.mxu0 0
    %388 = vmatprep.subr.bf16.mxu0 0
    %389 = vmatpush1.bf16.msra.mxu0 0
    %390 = vmatprep.subr.bf16.mxu0 0
    %391 = vmatpush1.bf16.msra.mxu0 0
    %392 = vmatprep.subr.bf16.mxu0 0
    %393 = vmatpush1.bf16.msra.mxu0 0
    %394 = vmatprep.mubr.bf16.mxu0 0
    %395 = vmatmul.mubr.bf16.gmra.mrb[0].mxu0 %v361
    %v396 = vpop.f32.mrb[0].mxu0
    %v397 = vadd.f32 0.0, %v396
    %v398 = vpop.f32.mrb[0].mxu0
    %v399 = vpop.f32.mrb[0].mxu0
    %v400 = vpop.f32.mrb[0].mxu0
    %401 = vdwg.mxu0
    %v402 = vadd.f32 %v360, %v397
    %v403 = vtanh.pop %v402
    %404 = vst [vmem:[%s359] sm:$0xff] %v403
    %s405 = scalar_lea.vmem [#allocation3], 16
    %v406 = vld [vmem:[%s405] sm:$0xff]
    %v407 = vpack.c.bf16 %v403, %v403
    %408 = vmatprep.subr.bf16.mxu0 0
    %409 = vmatpush1.bf16.msra.mxu0 %v300
    %410 = vmatprep.subr.bf16.mxu0 0
    %411 = vmatpush1.bf16.msra.mxu0 %v301
    %412 = vmatprep.subr.bf16.mxu0 0
    %413 = vmatpush1.bf16.msra.mxu0 %v302
    %414 = vmatprep.subr.bf16.mxu0 0
    %415 = vmatpush1.bf16.msra.mxu0 %v303
    %416 = vmatprep.subr.bf16.mxu0 0
    %417 = vmatpush1.bf16.msra.mxu0 %v304
    %418 = vmatprep.subr.bf16.mxu0 0
    %419 = vmatpush1.bf16.msra.mxu0 %v305
    %420 = vmatprep.subr.bf16.mxu0 0
    %421 = vmatpush1.bf16.msra.mxu0 %v306
    %422 = vmatprep.subr.bf16.mxu0 0
    %423 = vmatpush1.bf16.msra.mxu0 %v307
    %424 = vmatprep.subr.bf16.mxu0 0
    %425 = vmatpush1.bf16.msra.mxu0 0
    %426 = vmatprep.subr.bf16.mxu0 0
    %427 = vmatpush1.bf16.msra.mxu0 0
    %428 = vmatprep.subr.bf16.mxu0 0
    %429 = vmatpush1.bf16.msra.mxu0 0
    %430 = vmatprep.subr.bf16.mxu0 0
    %431 = vmatpush1.bf16.msra.mxu0 0
    %432 = vmatprep.subr.bf16.mxu0 0
    %433 = vmatpush1.bf16.msra.mxu0 0
    %434 = vmatprep.subr.bf16.mxu0 0
    %435 = vmatpush1.bf16.msra.mxu0 0
    %436 = vmatprep.subr.bf16.mxu0 0
    %437 = vmatpush1.bf16.msra.mxu0 0
    %438 = vmatprep.subr.bf16.mxu0 0
    %439 = vmatpush1.bf16.msra.mxu0 0
    %440 = vmatprep.mubr.bf16.mxu0 0
    %441 = vmatmul.mubr.bf16.gmra.mrb[0].mxu0 %v407
    %v442 = vpop.f32.mrb[0].mxu0
    %v443 = vadd.f32 0.0, %v442
    %v444 = vpop.f32.mrb[0].mxu0
    %v445 = vpop.f32.mrb[0].mxu0
    %v446 = vpop.f32.mrb[0].mxu0
    %447 = vdwg.mxu0
    %v448 = vadd.f32 %v406, %v443
    %v449 = vtanh.pop %v448
    %450 = vst [vmem:[%s405] sm:$0xff] %v449
    %s451 = scalar_lea.vmem [#allocation3], 24
    %v452 = vld [vmem:[%s451] sm:$0xff]
    %v453 = vpack.c.bf16 %v449, %v449
    %454 = vmatprep.subr.bf16.mxu0 0
    %455 = vmatpush1.bf16.msra.mxu0 %v300
    %456 = vmatprep.subr.bf16.mxu0 0
    %457 = vmatpush1.bf16.msra.mxu0 %v301
    %458 = vmatprep.subr.bf16.mxu0 0
    %459 = vmatpush1.bf16.msra.mxu0 %v302
    %460 = vmatprep.subr.bf16.mxu0 0
    %461 = vmatpush1.bf16.msra.mxu0 %v303
    %462 = vmatprep.subr.bf16.mxu0 0
    %463 = vmatpush1.bf16.msra.mxu0 %v304
    %464 = vmatprep.subr.bf16.mxu0 0
    %465 = vmatpush1.bf16.msra.mxu0 %v305
    %466 = vmatprep.subr.bf16.mxu0 0
    %467 = vmatpush1.bf16.msra.mxu0 %v306
    %468 = vmatprep.subr.bf16.mxu0 0
    %469 = vmatpush1.bf16.msra.mxu0 %v307
    %470 = vmatprep.subr.bf16.mxu0 0
    %471 = vmatpush1.bf16.msra.mxu0 0
    %472 = vmatprep.subr.bf16.mxu0 0
    %473 = vmatpush1.bf16.msra.mxu0 0
    %474 = vmatprep.subr.bf16.mxu0 0
    %475 = vmatpush1.bf16.msra.mxu0 0
    %476 = vmatprep.subr.bf16.mxu0 0
    %477 = vmatpush1.bf16.msra.mxu0 0
    %478 = vmatprep.subr.bf16.mxu0 0
    %479 = vmatpush1.bf16.msra.mxu0 0
    %480 = vmatprep.subr.bf16.mxu0 0
    %481 = vmatpush1.bf16.msra.mxu0 0
    %482 = vmatprep.subr.bf16.mxu0 0
    %483 = vmatpush1.bf16.msra.mxu0 0
    %484 = vmatprep.subr.bf16.mxu0 0
    %485 = vmatpush1.bf16.msra.mxu0 0
    %486 = vmatprep.mubr.bf16.mxu0 0
    %487 = vmatmul.mubr.bf16.gmra.mrb[0].mxu0 %v453
    %v488 = vpop.f32.mrb[0].mxu0
    %v489 = vadd.f32 0.0, %v488
    %v490 = vpop.f32.mrb[0].mxu0
    %v491 = vpop.f32.mrb[0].mxu0
    %v492 = vpop.f32.mrb[0].mxu0
    %493 = vdwg.mxu0
    %v494 = vadd.f32 %v452, %v489
    %v495 = vtanh.pop %v494
    %496 = vst [vmem:[%s451] sm:$0xff] %v495
    %s497 = scalar_lea.vmem [#allocation3], 32
    %v498 = vld [vmem:[%s497] sm:$0xff]
    %v499 = vpack.c.bf16 %v495, %v495
    %500 = vmatprep.subr.bf16.mxu0 0
    %501 = vmatpush1.bf16.msra.mxu0 %v300
    %502 = vmatprep.subr.bf16.mxu0 0
    %503 = vmatpush1.bf16.msra.mxu0 %v301
    %504 = vmatprep.subr.bf16.mxu0 0
    %505 = vmatpush1.bf16.msra.mxu0 %v302
    %506 = vmatprep.subr.bf16.mxu0 0
    %507 = vmatpush1.bf16.msra.mxu0 %v303
    %508 = vmatprep.subr.bf16.mxu0 0
    %509 = vmatpush1.bf16.msra.mxu0 %v304
    %510 = vmatprep.subr.bf16.mxu0 0
    %511 = vmatpush1.bf16.msra.mxu0 %v305
    %512 = vmatprep.subr.bf16.mxu0 0
    %513 = vmatpush1.bf16.msra.mxu0 %v306
    %514 = vmatprep.subr.bf16.mxu0 0
    %515 = vmatpush1.bf16.msra.mxu0 %v307
    %516 = vmatprep.subr.bf16.mxu0 0
    %517 = vmatpush1.bf16.msra.mxu0 0
    %518 = vmatprep.subr.bf16.mxu0 0
    %519 = vmatpush1.bf16.msra.mxu0 0
    %520 = vmatprep.subr.bf16.mxu0 0
    %521 = vmatpush1.bf16.msra.mxu0 0
    %522 = vmatprep.subr.bf16.mxu0 0
    %523 = vmatpush1.bf16.msra.mxu0 0
    %524 = vmatprep.subr.bf16.mxu0 0
    %525 = vmatpush1.bf16.msra.mxu0 0
    %526 = vmatprep.subr.bf16.mxu0 0
    %527 = vmatpush1.bf16.msra.mxu0 0
    %528 = vmatprep.subr.bf16.mxu0 0
    %529 = vmatpush1.bf16.msra.mxu0 0
    %530 = vmatprep.subr.bf16.mxu0 0
    %531 = vmatpush1.bf16.msra.mxu0 0
    %532 = vmatprep.mubr.bf16.mxu0 0
    %533 = vmatmul.mubr.bf16.gmra.mrb[0].mxu0 %v499
    %v534 = vpop.f32.mrb[0].mxu0
    %v535 = vadd.f32 0.0, %v534
    %v536 = vpop.f32.mrb[0].mxu0
    %v537 = vpop.f32.mrb[0].mxu0
    %v538 = vpop.f32.mrb[0].mxu0
    %539 = vdwg.mxu0
    %v540 = vadd.f32 %v498, %v535
    %v541 = vtanh.pop %v540
    %542 = vst [vmem:[%s497] sm:$0xff] %v541
    %s543 = scalar_lea.vmem [#allocation3], 40
    %v544 = vld [vmem:[%s543] sm:$0xff]
    %v545 = vpack.c.bf16 %v541, %v541
    %546 = vmatprep.subr.bf16.mxu0 0
    %547 = vmatpush1.bf16.msra.mxu0 %v300
    %548 = vmatprep.subr.bf16.mxu0 0
    %549 = vmatpush1.bf16.msra.mxu0 %v301
    %550 = vmatprep.subr.bf16.mxu0 0
    %551 = vmatpush1.bf16.msra.mxu0 %v302
    %552 = vmatprep.subr.bf16.mxu0 0
    %553 = vmatpush1.bf16.msra.mxu0 %v303
    %554 = vmatprep.subr.bf16.mxu0 0
    %555 = vmatpush1.bf16.msra.mxu0 %v304
    %556 = vmatprep.subr.bf16.mxu0 0
    %557 = vmatpush1.bf16.msra.mxu0 %v305
    %558 = vmatprep.subr.bf16.mxu0 0
    %559 = vmatpush1.bf16.msra.mxu0 %v306
    %560 = vmatprep.subr.bf16.mxu0 0
    %561 = vmatpush1.bf16.msra.mxu0 %v307
    %562 = vmatprep.subr.bf16.mxu0 0
    %563 = vmatpush1.bf16.msra.mxu0 0
    %564 = vmatprep.subr.bf16.mxu0 0
    %565 = vmatpush1.bf16.msra.mxu0 0
    %566 = vmatprep.subr.bf16.mxu0 0
    %567 = vmatpush1.bf16.msra.mxu0 0
    %568 = vmatprep.subr.bf16.mxu0 0
    %569 = vmatpush1.bf16.msra.mxu0 0
    %570 = vmatprep.subr.bf16.mxu0 0
    %571 = vmatpush1.bf16.msra.mxu0 0
    %572 = vmatprep.subr.bf16.mxu0 0
    %573 = vmatpush1.bf16.msra.mxu0 0
    %574 = vmatprep.subr.bf16.mxu0 0
    %575 = vmatpush1.bf16.msra.mxu0 0
    %576 = vmatprep.subr.bf16.mxu0 0
    %577 = vmatpush1.bf16.msra.mxu0 0
    %578 = vmatprep.mubr.bf16.mxu0 0
    %579 = vmatmul.mubr.bf16.gmra.mrb[0].mxu0 %v545
    %v580 = vpop.f32.mrb[0].mxu0
    %v581 = vadd.f32 0.0, %v580
    %v582 = vpop.f32.mrb[0].mxu0
    %v583 = vpop.f32.mrb[0].mxu0
    %v584 = vpop.f32.mrb[0].mxu0
    %585 = vdwg.mxu0
    %v586 = vadd.f32 %v544, %v581
    %v587 = vtanh.pop %v586
    %588 = vst [vmem:[%s543] sm:$0xff] %v587
    %s589 = scalar_lea.vmem [#allocation3], 48
    %v590 = vld [vmem:[%s589] sm:$0xff]
    %v591 = vpack.c.bf16 %v587, %v587
    %592 = vmatprep.subr.bf16.mxu0 0
    %593 = vmatpush1.bf16.msra.mxu0 %v300
    %594 = vmatprep.subr.bf16.mxu0 0
    %595 = vmatpush1.bf16.msra.mxu0 %v301
    %596 = vmatprep.subr.bf16.mxu0 0
    %597 = vmatpush1.bf16.msra.mxu0 %v302
    %598 = vmatprep.subr.bf16.mxu0 0
    %599 = vmatpush1.bf16.msra.mxu0 %v303
    %600 = vmatprep.subr.bf16.mxu0 0
    %601 = vmatpush1.bf16.msra.mxu0 %v304
    %602 = vmatprep.subr.bf16.mxu0 0
    %603 = vmatpush1.bf16.msra.mxu0 %v305
    %604 = vmatprep.subr.bf16.mxu0 0
    %605 = vmatpush1.bf16.msra.mxu0 %v306
    %606 = vmatprep.subr.bf16.mxu0 0
    %607 = vmatpush1.bf16.msra.mxu0 %v307
    %608 = vmatprep.subr.bf16.mxu0 0
    %609 = vmatpush1.bf16.msra.mxu0 0
    %610 = vmatprep.subr.bf16.mxu0 0
    %611 = vmatpush1.bf16.msra.mxu0 0
    %612 = vmatprep.subr.bf16.mxu0 0
    %613 = vmatpush1.bf16.msra.mxu0 0
    %614 = vmatprep.subr.bf16.mxu0 0
    %615 = vmatpush1.bf16.msra.mxu0 0
    %616 = vmatprep.subr.bf16.mxu0 0
    %617 = vmatpush1.bf16.msra.mxu0 0
    %618 = vmatprep.subr.bf16.mxu0 0
    %619 = vmatpush1.bf16.msra.mxu0 0
    %620 = vmatprep.subr.bf16.mxu0 0
    %621 = vmatpush1.bf16.msra.mxu0 0
    %622 = vmatprep.subr.bf16.mxu0 0
    %623 = vmatpush1.bf16.msra.mxu0 0
    %624 = vmatprep.mubr.bf16.mxu0 0
    %625 = vmatmul.mubr.bf16.gmra.mrb[0].mxu0 %v591
    %v626 = vpop.f32.mrb[0].mxu0
    %v627 = vadd.f32 0.0, %v626
    %v628 = vpop.f32.mrb[0].mxu0
    %v629 = vpop.f32.mrb[0].mxu0
    %v630 = vpop.f32.mrb[0].mxu0
    %631 = vdwg.mxu0
    %v632 = vadd.f32 %v590, %v627
    %v633 = vtanh.pop %v632
    %634 = vst [vmem:[%s589] sm:$0xff] %v633
    %s635 = scalar_lea.vmem [#allocation3], 56
    %v636 = vld [vmem:[%s635] sm:$0xff]
    %v637 = vpack.c.bf16 %v633, %v633
    %638 = vmatprep.subr.bf16.mxu0 0
    %639 = vmatpush1.bf16.msra.mxu0 %v300
    %640 = vmatprep.subr.bf16.mxu0 0
    %641 = vmatpush1.bf16.msra.mxu0 %v301
    %642 = vmatprep.subr.bf16.mxu0 0
    %643 = vmatpush1.bf16.msra.mxu0 %v302
    %644 = vmatprep.subr.bf16.mxu0 0
    %645 = vmatpush1.bf16.msra.mxu0 %v303
    %646 = vmatprep.subr.bf16.mxu0 0
    %647 = vmatpush1.bf16.msra.mxu0 %v304
    %648 = vmatprep.subr.bf16.mxu0 0
    %649 = vmatpush1.bf16.msra.mxu0 %v305
    %650 = vmatprep.subr.bf16.mxu0 0
    %651 = vmatpush1.bf16.msra.mxu0 %v306
    %652 = vmatprep.subr.bf16.mxu0 0
    %653 = vmatpush1.bf16.msra.mxu0 %v307
    %654 = vmatprep.subr.bf16.mxu0 0
    %655 = vmatpush1.bf16.msra.mxu0 0
    %656 = vmatprep.subr.bf16.mxu0 0
    %657 = vmatpush1.bf16.msra.mxu0 0
    %658 = vmatprep.subr.bf16.mxu0 0
    %659 = vmatpush1.bf16.msra.mxu0 0
    %660 = vmatprep.subr.bf16.mxu0 0
    %661 = vmatpush1.bf16.msra.mxu0 0
    %662 = vmatprep.subr.bf16.mxu0 0
    %663 = vmatpush1.bf16.msra.mxu0 0
    %664 = vmatprep.subr.bf16.mxu0 0
    %665 = vmatpush1.bf16.msra.mxu0 0
    %666 = vmatprep.subr.bf16.mxu0 0
    %667 = vmatpush1.bf16.msra.mxu0 0
    %668 = vmatprep.subr.bf16.mxu0 0
    %669 = vmatpush1.bf16.msra.mxu0 0
    %670 = vmatprep.mubr.bf16.mxu0 0
    %671 = vmatmul.mubr.bf16.gmra.mrb[0].mxu0 %v637
    %v672 = vpop.f32.mrb[0].mxu0
    %v673 = vadd.f32 0.0, %v672
    %v674 = vpop.f32.mrb[0].mxu0
    %v675 = vpop.f32.mrb[0].mxu0
    %v676 = vpop.f32.mrb[0].mxu0
    %677 = vdwg.mxu0
    %v678 = vadd.f32 %v636, %v673
    %v679 = vtanh.pop %v678
    %680 = vst [vmem:[%s635] sm:$0xff] %v679
    %681 = vst [vmem:[#allocation2] sm:$0xff] %v679
    %v682 = vld [vmem:[#allocation3] sm:$0xff]
    %v683 = vld [vmem:[#allocation3 + $0x8] sm:$0xff]
    %v684 = vld [vmem:[#allocation3 + $0x10] sm:$0xff]
    %v685 = vld [vmem:[#allocation3 + $0x18] sm:$0xff]
    %v686 = vld [vmem:[#allocation3 + $0x20] sm:$0xff]
    %v687 = vld [vmem:[#allocation3 + $0x28] sm:$0xff]
    %v688 = vld [vmem:[#allocation3 + $0x30] sm:$0xff]
    %v689 = vld [vmem:[#allocation3 + $0x38] sm:$0xff]
    %v690 = vpack.c.bf16 %v683, %v682
    %v691 = vpack.c.bf16 %v685, %v684
    %v692 = vpack.c.bf16 %v687, %v686
    %v693 = vpack.c.bf16 %v689, %v688
    %v694 = vld [vmem:[#allocation7] sm:$0xf]
    %v695 = vld [vmem:[#allocation7 + $0x4] sm:$0xf]
    %v696 = vld [vmem:[#allocation7 + $0x8] sm:$0xf]
    %v697 = vld [vmem:[#allocation7 + $0xc] sm:$0xf]
    %v698 = vld [vmem:[#allocation7 + $0x10] sm:$0xf]
    %v699 = vld [vmem:[#allocation7 + $0x14] sm:$0xf]
    %v700 = vld [vmem:[#allocation7 + $0x18] sm:$0xf]
    %v701 = vld [vmem:[#allocation7 + $0x1c] sm:$0xf]
    %v702 = vld [vmem:[#allocation7 + $0x20] sm:$0xf]
    %v703 = vld [vmem:[#allocation7 + $0x24] sm:$0xf]
    %v704 = vld [vmem:[#allocation7 + $0x28] sm:$0xf]
    %v705 = vld [vmem:[#allocation7 + $0x2c] sm:$0xf]
    %v706 = vld [vmem:[#allocation7 + $0x30] sm:$0xf]
    %v707 = vld [vmem:[#allocation7 + $0x34] sm:$0xf]
    %v708 = vld [vmem:[#allocation7 + $0x38] sm:$0xf]
    %v709 = vld [vmem:[#allocation7 + $0x3c] sm:$0xf]
    %v710 = vld [vmem:[%s4] sm:$0x1]
    %v712 = vlaneseq
    %v713 = vshrl.u32 %v712, 7
    %v714 = vsub.s32 0, %v713
    %v715 = vrot.slane %v710, %v714
    %v733 = vunpack.c.l.b16 %v694
    %v734 = vunpack.c.l.b16 %v695
    %v735 = vunpack.c.l.b16 %v696
    %v736 = vunpack.c.l.b16 %v697
    %v737 = vunpack.c.l.b16 %v698
    %v738 = vunpack.c.l.b16 %v699
    %v739 = vunpack.c.l.b16 %v700
    %v740 = vunpack.c.l.b16 %v701
    %v741 = vunpack.c.l.b16 %v702
    %v742 = vunpack.c.l.b16 %v703
    %v743 = vunpack.c.l.b16 %v704
    %v744 = vunpack.c.l.b16 %v705
    %v745 = vunpack.c.l.b16 %v706
    %v746 = vunpack.c.l.b16 %v707
    %v747 = vunpack.c.l.b16 %v708
    %v748 = vunpack.c.l.b16 %v709
    %v749 = vpack.c.b16 %v734, %v733
    %v750 = vpack.c.b16 %v736, %v735
    %v751 = vpack.c.b16 %v738, %v737
    %v752 = vpack.c.b16 %v740, %v739
    %v753 = vpack.c.b16 %v742, %v741
    %v754 = vpack.c.b16 %v744, %v743
    %v755 = vpack.c.b16 %v746, %v745
    %v756 = vpack.c.b16 %v748, %v747
    %765 = vmatprep.subr.bf16.mxu0 0
    %766 = vmatpush1.bf16.msra.mxu0 %v749
    %767 = vmatprep.subr.bf16.mxu0 0
    %768 = vmatpush1.bf16.msra.mxu0 %v750
    %769 = vmatprep.subr.bf16.mxu0 0
    %770 = vmatpush1.bf16.msra.mxu0 %v751
    %771 = vmatprep.subr.bf16.mxu0 0
    %772 = vmatpush1.bf16.msra.mxu0 %v752
    %773 = vmatprep.subr.bf16.mxu0 0
    %774 = vmatpush1.bf16.msra.mxu0 %v753
    %775 = vmatprep.subr.bf16.mxu0 0
    %776 = vmatpush1.bf16.msra.mxu0 %v754
    %777 = vmatprep.subr.bf16.mxu0 0
    %778 = vmatpush1.bf16.msra.mxu0 %v755
    %779 = vmatprep.subr.bf16.mxu0 0
    %780 = vmatpush1.bf16.msra.mxu0 %v756
    %781 = vmatprep.subr.bf16.mxu0 0
    %782 = vmatpush1.bf16.msra.mxu0 0
    %783 = vmatprep.subr.bf16.mxu0 0
    %784 = vmatpush1.bf16.msra.mxu0 0
    %785 = vmatprep.subr.bf16.mxu0 0
    %786 = vmatpush1.bf16.msra.mxu0 0
    %787 = vmatprep.subr.bf16.mxu0 0
    %788 = vmatpush1.bf16.msra.mxu0 0
    %789 = vmatprep.subr.bf16.mxu0 0
    %790 = vmatpush1.bf16.msra.mxu0 0
    %791 = vmatprep.subr.bf16.mxu0 0
    %792 = vmatpush1.bf16.msra.mxu0 0
    %793 = vmatprep.subr.bf16.mxu0 0
    %794 = vmatpush1.bf16.msra.mxu0 0
    %795 = vmatprep.subr.bf16.mxu0 0
    %796 = vmatpush1.bf16.msra.mxu0 0
    %797 = vmatprep.mubr.bf16.mxu0 0
    %798 = vmatmul.mubr.bf16.gmra.mrb[0].mxu0 %v690
    %v799 = vpop.f32.mrb[0].mxu0
    %v800 = vadd.f32 %v715, %v799
    %v801 = vpop.f32.mrb[0].mxu0
    %v802 = vpop.f32.mrb[0].mxu0
    %v803 = vadd.f32 %v715, %v802
    %v804 = vpop.f32.mrb[0].mxu0
    %805 = vmatprep.mubr.bf16.mxu0 0
    %806 = vmatmul.mubr.bf16.gmra.mrb[0].mxu0 %v691
    %v807 = vpop.f32.mrb[0].mxu0
    %v808 = vadd.f32 %v715, %v807
    %v809 = vpop.f32.mrb[0].mxu0
    %v810 = vpop.f32.mrb[0].mxu0
    %v811 = vadd.f32 %v715, %v810
    %v812 = vpop.f32.mrb[0].mxu0
    %813 = vmatprep.mubr.bf16.mxu0 0
    %814 = vmatmul.mubr.bf16.gmra.mrb[0].mxu0 %v692
    %v815 = vpop.f32.mrb[0].mxu0
    %v816 = vadd.f32 %v715, %v815
    %v817 = vpop.f32.mrb[0].mxu0
    %v818 = vpop.f32.mrb[0].mxu0
    %v819 = vadd.f32 %v715, %v818
    %v820 = vpop.f32.mrb[0].mxu0
    %821 = vmatprep.mubr.bf16.mxu0 0
    %822 = vmatmul.mubr.bf16.gmra.mrb[0].mxu0 %v693
    %v823 = vpop.f32.mrb[0].mxu0
    %v824 = vadd.f32 %v715, %v823
    %v825 = vpop.f32.mrb[0].mxu0
    %v826 = vpop.f32.mrb[0].mxu0
    %v827 = vadd.f32 %v715, %v826
    %v828 = vpop.f32.mrb[0].mxu0
    %829 = vdwg.mxu0
    %v830 = vxor.u32 %v800, 2147483648
    %v831 = vxor.u32 %v803, 2147483648
    %v832 = vxor.u32 %v808, 2147483648
    %v833 = vxor.u32 %v811, 2147483648
    %v834 = vxor.u32 %v816, 2147483648
    %v835 = vxor.u32 %v819, 2147483648
    %v836 = vxor.u32 %v824, 2147483648
    %v837 = vxor.u32 %v827, 2147483648
    %v838 = vmul.f32 %v830, 1.442695
    %v839 = vpow.pop %v838
    %v840 = vmul.f32 %v831, 1.442695
    %v841 = vpow.pop %v840
    %v842 = vmul.f32 %v832, 1.442695
    %v843 = vpow.pop %v842
    %v844 = vmul.f32 %v833, 1.442695
    %v845 = vpow.pop %v844
    %v846 = vmul.f32 %v834, 1.442695
    %v847 = vpow.pop %v846
    %v848 = vmul.f32 %v835, 1.442695
    %v849 = vpow.pop %v848
    %v850 = vmul.f32 %v836, 1.442695
    %v851 = vpow.pop %v850
    %v852 = vmul.f32 %v837, 1.442695
    %v853 = vpow.pop %v852
    %v854 = vadd.f32 %v839, 1.0
    %v855 = vadd.f32 %v841, 1.0
    %v856 = vadd.f32 %v843, 1.0
    %v857 = vadd.f32 %v845, 1.0
    %v858 = vadd.f32 %v847, 1.0
    %v859 = vadd.f32 %v849, 1.0
    %v860 = vadd.f32 %v851, 1.0
    %v861 = vadd.f32 %v853, 1.0
    %v862 = vrcp.pop %v854
    %v863 = vmul.f32 1.0, %v862
    %v864 = vrcp.pop %v855
    %v865 = vmul.f32 1.0, %v864
    %v866 = vrcp.pop %v856
    %v867 = vmul.f32 1.0, %v866
    %v868 = vrcp.pop %v857
    %v869 = vmul.f32 1.0, %v868
    %v870 = vrcp.pop %v858
    %v871 = vmul.f32 1.0, %v870
    %v872 = vrcp.pop %v859
    %v873 = vmul.f32 1.0, %v872
    %v874 = vrcp.pop %v860
    %v875 = vmul.f32 1.0, %v874
    %v876 = vrcp.pop %v861
    %v877 = vmul.f32 1.0, %v876
    %v879 = vcombine.high %v863, %v863
    %v881 = vunpack.c.l.s4 1966171168
    %v882 = vunpack.c.0.s8 %v881
    %v883 = vlaneseq
    %v884 = vshrl.u32 %v883, 7
    %v885 = vsub.s32 %v882, %v884
    %v886 = vrot.slane %v863, %v885
    %v888 = vunpack.c.l.s4 1966171168
    %v889 = vunpack.c.0.s8 %v888
    %v890 = vlaneseq
    %v891 = vshrl.u32 %v890, 7
    %v892 = vsub.s32 %v889, %v891
    %v893 = vrot.slane %v879, %v892
    %v894 = vcombine.high %v886, %v886
    %v895 = vcombine.high %v893, %v893
    %v897 = vunpack.c.l.s4 1966171168
    %v898 = vunpack.c.0.s8 %v897
    %v899 = vlaneseq
    %v900 = vshrl.u32 %v899, 7
    %v901 = vsub.s32 %v898, %v900
    %v902 = vrot.slane %v886, %v901
    %v904 = vunpack.c.l.s4 1966171168
    %v905 = vunpack.c.0.s8 %v904
    %v906 = vlaneseq
    %v907 = vshrl.u32 %v906, 7
    %v908 = vsub.s32 %v905, %v907
    %v909 = vrot.slane %v893, %v908
    %v911 = vunpack.c.l.s4 1966171168
    %v912 = vunpack.c.0.s8 %v911
    %v913 = vlaneseq
    %v914 = vshrl.u32 %v913, 7
    %v915 = vsub.s32 %v912, %v914
    %v916 = vrot.slane %v894, %v915
    %v918 = vunpack.c.l.s4 1966171168
    %v919 = vunpack.c.0.s8 %v918
    %v920 = vlaneseq
    %v921 = vshrl.u32 %v920, 7
    %v922 = vsub.s32 %v919, %v921
    %v923 = vrot.slane %v895, %v922
    %v924 = vcombine.high %v902, %v902
    %v925 = vcombine.high %v909, %v909
    %v926 = vcombine.high %v916, %v916
    %v927 = vcombine.high %v923, %v923
    %936 = vst [vmem:[#allocation9] sm:$0x1] %v902
    %937 = vst [vmem:[#allocation9 + $0x8] sm:$0x1] %v916
    %938 = vst [vmem:[#allocation9 + $0x10] sm:$0x1] %v924
    %939 = vst [vmem:[#allocation9 + $0x18] sm:$0x1] %v926
    %940 = vst [vmem:[#allocation9 + $0x20] sm:$0x1] %v909
    %941 = vst [vmem:[#allocation9 + $0x28] sm:$0x1] %v923
    %942 = vst [vmem:[#allocation9 + $0x30] sm:$0x1] %v925
    %943 = vst [vmem:[#allocation9 + $0x38] sm:$0x1] %v927
    %v945 = vcombine.high %v865, %v865
    %v947 = vunpack.c.l.s4 1966171168
    %v948 = vunpack.c.0.s8 %v947
    %v949 = vlaneseq
    %v950 = vshrl.u32 %v949, 7
    %v951 = vsub.s32 %v948, %v950
    %v952 = vrot.slane %v865, %v951
    %v954 = vunpack.c.l.s4 1966171168
    %v955 = vunpack.c.0.s8 %v954
    %v956 = vlaneseq
    %v957 = vshrl.u32 %v956, 7
    %v958 = vsub.s32 %v955, %v957
    %v959 = vrot.slane %v945, %v958
    %v960 = vcombine.high %v952, %v952
    %v961 = vcombine.high %v959, %v959
    %v963 = vunpack.c.l.s4 1966171168
    %v964 = vunpack.c.0.s8 %v963
    %v965 = vlaneseq
    %v966 = vshrl.u32 %v965, 7
    %v967 = vsub.s32 %v964, %v966
    %v968 = vrot.slane %v952, %v967
    %v970 = vunpack.c.l.s4 1966171168
    %v971 = vunpack.c.0.s8 %v970
    %v972 = vlaneseq
    %v973 = vshrl.u32 %v972, 7
    %v974 = vsub.s32 %v971, %v973
    %v975 = vrot.slane %v959, %v974
    %v977 = vunpack.c.l.s4 1966171168
    %v978 = vunpack.c.0.s8 %v977
    %v979 = vlaneseq
    %v980 = vshrl.u32 %v979, 7
    %v981 = vsub.s32 %v978, %v980
    %v982 = vrot.slane %v960, %v981
    %v984 = vunpack.c.l.s4 1966171168
    %v985 = vunpack.c.0.s8 %v984
    %v986 = vlaneseq
    %v987 = vshrl.u32 %v986, 7
    %v988 = vsub.s32 %v985, %v987
    %v989 = vrot.slane %v961, %v988
    %v990 = vcombine.high %v968, %v968
    %v991 = vcombine.high %v975, %v975
    %v992 = vcombine.high %v982, %v982
    %v993 = vcombine.high %v989, %v989
    %1002 = vst [vmem:[#allocation9 + $0x1] sm:$0x1] %v968
    %1003 = vst [vmem:[#allocation9 + $0x9] sm:$0x1] %v982
    %1004 = vst [vmem:[#allocation9 + $0x11] sm:$0x1] %v990
    %1005 = vst [vmem:[#allocation9 + $0x19] sm:$0x1] %v992
    %1006 = vst [vmem:[#allocation9 + $0x21] sm:$0x1] %v975
    %1007 = vst [vmem:[#allocation9 + $0x29] sm:$0x1] %v989
    %1008 = vst [vmem:[#allocation9 + $0x31] sm:$0x1] %v991
    %1009 = vst [vmem:[#allocation9 + $0x39] sm:$0x1] %v993
    %v1011 = vcombine.high %v867, %v867
    %v1013 = vunpack.c.l.s4 1966171168
    %v1014 = vunpack.c.0.s8 %v1013
    %v1015 = vlaneseq
    %v1016 = vshrl.u32 %v1015, 7
    %v1017 = vsub.s32 %v1014, %v1016
    %v1018 = vrot.slane %v867, %v1017
    %v1020 = vunpack.c.l.s4 1966171168
    %v1021 = vunpack.c.0.s8 %v1020
    %v1022 = vlaneseq
    %v1023 = vshrl.u32 %v1022, 7
    %v1024 = vsub.s32 %v1021, %v1023
    %v1025 = vrot.slane %v1011, %v1024
    %v1026 = vcombine.high %v1018, %v1018
    %v1027 = vcombine.high %v1025, %v1025
    %v1029 = vunpack.c.l.s4 1966171168
    %v1030 = vunpack.c.0.s8 %v1029
    %v1031 = vlaneseq
    %v1032 = vshrl.u32 %v1031, 7
    %v1033 = vsub.s32 %v1030, %v1032
    %v1034 = vrot.slane %v1018, %v1033
    %v1036 = vunpack.c.l.s4 1966171168
    %v1037 = vunpack.c.0.s8 %v1036
    %v1038 = vlaneseq
    %v1039 = vshrl.u32 %v1038, 7
    %v1040 = vsub.s32 %v1037, %v1039
    %v1041 = vrot.slane %v1025, %v1040
    %v1043 = vunpack.c.l.s4 1966171168
    %v1044 = vunpack.c.0.s8 %v1043
    %v1045 = vlaneseq
    %v1046 = vshrl.u32 %v1045, 7
    %v1047 = vsub.s32 %v1044, %v1046
    %v1048 = vrot.slane %v1026, %v1047
    %v1050 = vunpack.c.l.s4 1966171168
    %v1051 = vunpack.c.0.s8 %v1050
    %v1052 = vlaneseq
    %v1053 = vshrl.u32 %v1052, 7
    %v1054 = vsub.s32 %v1051, %v1053
    %v1055 = vrot.slane %v1027, %v1054
    %v1056 = vcombine.high %v1034, %v1034
    %v1057 = vcombine.high %v1041, %v1041
    %v1058 = vcombine.high %v1048, %v1048
    %v1059 = vcombine.high %v1055, %v1055
    %1068 = vst [vmem:[#allocation9 + $0x2] sm:$0x1] %v1034
    %1069 = vst [vmem:[#allocation9 + $0xa] sm:$0x1] %v1048
    %1070 = vst [vmem:[#allocation9 + $0x12] sm:$0x1] %v1056
    %1071 = vst [vmem:[#allocation9 + $0x1a] sm:$0x1] %v1058
    %1072 = vst [vmem:[#allocation9 + $0x22] sm:$0x1] %v1041
    %1073 = vst [vmem:[#allocation9 + $0x2a] sm:$0x1] %v1055
    %1074 = vst [vmem:[#allocation9 + $0x32] sm:$0x1] %v1057
    %1075 = vst [vmem:[#allocation9 + $0x3a] sm:$0x1] %v1059
    %v1077 = vcombine.high %v869, %v869
    %v1079 = vunpack.c.l.s4 1966171168
    %v1080 = vunpack.c.0.s8 %v1079
    %v1081 = vlaneseq
    %v1082 = vshrl.u32 %v1081, 7
    %v1083 = vsub.s32 %v1080, %v1082
    %v1084 = vrot.slane %v869, %v1083
    %v1086 = vunpack.c.l.s4 1966171168
    %v1087 = vunpack.c.0.s8 %v1086
    %v1088 = vlaneseq
    %v1089 = vshrl.u32 %v1088, 7
    %v1090 = vsub.s32 %v1087, %v1089
    %v1091 = vrot.slane %v1077, %v1090
    %v1092 = vcombine.high %v1084, %v1084
    %v1093 = vcombine.high %v1091, %v1091
    %v1095 = vunpack.c.l.s4 1966171168
    %v1096 = vunpack.c.0.s8 %v1095
    %v1097 = vlaneseq
    %v1098 = vshrl.u32 %v1097, 7
    %v1099 = vsub.s32 %v1096, %v1098
    %v1100 = vrot.slane %v1084, %v1099
    %v1102 = vunpack.c.l.s4 1966171168
    %v1103 = vunpack.c.0.s8 %v1102
    %v1104 = vlaneseq
    %v1105 = vshrl.u32 %v1104, 7
    %v1106 = vsub.s32 %v1103, %v1105
    %v1107 = vrot.slane %v1091, %v1106
    %v1109 = vunpack.c.l.s4 1966171168
    %v1110 = vunpack.c.0.s8 %v1109
    %v1111 = vlaneseq
    %v1112 = vshrl.u32 %v1111, 7
    %v1113 = vsub.s32 %v1110, %v1112
    %v1114 = vrot.slane %v1092, %v1113
    %v1116 = vunpack.c.l.s4 1966171168
    %v1117 = vunpack.c.0.s8 %v1116
    %v1118 = vlaneseq
    %v1119 = vshrl.u32 %v1118, 7
    %v1120 = vsub.s32 %v1117, %v1119
    %v1121 = vrot.slane %v1093, %v1120
    %v1122 = vcombine.high %v1100, %v1100
    %v1123 = vcombine.high %v1107, %v1107
    %v1124 = vcombine.high %v1114, %v1114
    %v1125 = vcombine.high %v1121, %v1121
    %1134 = vst [vmem:[#allocation9 + $0x3] sm:$0x1] %v1100
    %1135 = vst [vmem:[#allocation9 + $0xb] sm:$0x1] %v1114
    %1136 = vst [vmem:[#allocation9 + $0x13] sm:$0x1] %v1122
    %1137 = vst [vmem:[#allocation9 + $0x1b] sm:$0x1] %v1124
    %1138 = vst [vmem:[#allocation9 + $0x23] sm:$0x1] %v1107
    %1139 = vst [vmem:[#allocation9 + $0x2b] sm:$0x1] %v1121
    %1140 = vst [vmem:[#allocation9 + $0x33] sm:$0x1] %v1123
    %1141 = vst [vmem:[#allocation9 + $0x3b] sm:$0x1] %v1125
    %v1143 = vcombine.high %v871, %v871
    %v1145 = vunpack.c.l.s4 1966171168
    %v1146 = vunpack.c.0.s8 %v1145
    %v1147 = vlaneseq
    %v1148 = vshrl.u32 %v1147, 7
    %v1149 = vsub.s32 %v1146, %v1148
    %v1150 = vrot.slane %v871, %v1149
    %v1152 = vunpack.c.l.s4 1966171168
    %v1153 = vunpack.c.0.s8 %v1152
    %v1154 = vlaneseq
    %v1155 = vshrl.u32 %v1154, 7
    %v1156 = vsub.s32 %v1153, %v1155
    %v1157 = vrot.slane %v1143, %v1156
    %v1158 = vcombine.high %v1150, %v1150
    %v1159 = vcombine.high %v1157, %v1157
    %v1161 = vunpack.c.l.s4 1966171168
    %v1162 = vunpack.c.0.s8 %v1161
    %v1163 = vlaneseq
    %v1164 = vshrl.u32 %v1163, 7
    %v1165 = vsub.s32 %v1162, %v1164
    %v1166 = vrot.slane %v1150, %v1165
    %v1168 = vunpack.c.l.s4 1966171168
    %v1169 = vunpack.c.0.s8 %v1168
    %v1170 = vlaneseq
    %v1171 = vshrl.u32 %v1170, 7
    %v1172 = vsub.s32 %v1169, %v1171
    %v1173 = vrot.slane %v1157, %v1172
    %v1175 = vunpack.c.l.s4 1966171168
    %v1176 = vunpack.c.0.s8 %v1175
    %v1177 = vlaneseq
    %v1178 = vshrl.u32 %v1177, 7
    %v1179 = vsub.s32 %v1176, %v1178
    %v1180 = vrot.slane %v1158, %v1179
    %v1182 = vunpack.c.l.s4 1966171168
    %v1183 = vunpack.c.0.s8 %v1182
    %v1184 = vlaneseq
    %v1185 = vshrl.u32 %v1184, 7
    %v1186 = vsub.s32 %v1183, %v1185
    %v1187 = vrot.slane %v1159, %v1186
    %v1188 = vcombine.high %v1166, %v1166
    %v1189 = vcombine.high %v1173, %v1173
    %v1190 = vcombine.high %v1180, %v1180
    %v1191 = vcombine.high %v1187, %v1187
    %1200 = vst [vmem:[#allocation9 + $0x4] sm:$0x1] %v1166
    %1201 = vst [vmem:[#allocation9 + $0xc] sm:$0x1] %v1180
    %1202 = vst [vmem:[#allocation9 + $0x14] sm:$0x1] %v1188
    %1203 = vst [vmem:[#allocation9 + $0x1c] sm:$0x1] %v1190
    %1204 = vst [vmem:[#allocation9 + $0x24] sm:$0x1] %v1173
    %1205 = vst [vmem:[#allocation9 + $0x2c] sm:$0x1] %v1187
    %1206 = vst [vmem:[#allocation9 + $0x34] sm:$0x1] %v1189
    %1207 = vst [vmem:[#allocation9 + $0x3c] sm:$0x1] %v1191
    %v1209 = vcombine.high %v873, %v873
    %v1211 = vunpack.c.l.s4 1966171168
    %v1212 = vunpack.c.0.s8 %v1211
    %v1213 = vlaneseq
    %v1214 = vshrl.u32 %v1213, 7
    %v1215 = vsub.s32 %v1212, %v1214
    %v1216 = vrot.slane %v873, %v1215
    %v1218 = vunpack.c.l.s4 1966171168
    %v1219 = vunpack.c.0.s8 %v1218
    %v1220 = vlaneseq
    %v1221 = vshrl.u32 %v1220, 7
    %v1222 = vsub.s32 %v1219, %v1221
    %v1223 = vrot.slane %v1209, %v1222
    %v1224 = vcombine.high %v1216, %v1216
    %v1225 = vcombine.high %v1223, %v1223
    %v1227 = vunpack.c.l.s4 1966171168
    %v1228 = vunpack.c.0.s8 %v1227
    %v1229 = vlaneseq
    %v1230 = vshrl.u32 %v1229, 7
    %v1231 = vsub.s32 %v1228, %v1230
    %v1232 = vrot.slane %v1216, %v1231
    %v1234 = vunpack.c.l.s4 1966171168
    %v1235 = vunpack.c.0.s8 %v1234
    %v1236 = vlaneseq
    %v1237 = vshrl.u32 %v1236, 7
    %v1238 = vsub.s32 %v1235, %v1237
    %v1239 = vrot.slane %v1223, %v1238
    %v1241 = vunpack.c.l.s4 1966171168
    %v1242 = vunpack.c.0.s8 %v1241
    %v1243 = vlaneseq
    %v1244 = vshrl.u32 %v1243, 7
    %v1245 = vsub.s32 %v1242, %v1244
    %v1246 = vrot.slane %v1224, %v1245
    %v1248 = vunpack.c.l.s4 1966171168
    %v1249 = vunpack.c.0.s8 %v1248
    %v1250 = vlaneseq
    %v1251 = vshrl.u32 %v1250, 7
    %v1252 = vsub.s32 %v1249, %v1251
    %v1253 = vrot.slane %v1225, %v1252
    %v1254 = vcombine.high %v1232, %v1232
    %v1255 = vcombine.high %v1239, %v1239
    %v1256 = vcombine.high %v1246, %v1246
    %v1257 = vcombine.high %v1253, %v1253
    %1266 = vst [vmem:[#allocation9 + $0x5] sm:$0x1] %v1232
    %1267 = vst [vmem:[#allocation9 + $0xd] sm:$0x1] %v1246
    %1268 = vst [vmem:[#allocation9 + $0x15] sm:$0x1] %v1254
    %1269 = vst [vmem:[#allocation9 + $0x1d] sm:$0x1] %v1256
    %1270 = vst [vmem:[#allocation9 + $0x25] sm:$0x1] %v1239
    %1271 = vst [vmem:[#allocation9 + $0x2d] sm:$0x1] %v1253
    %1272 = vst [vmem:[#allocation9 + $0x35] sm:$0x1] %v1255
    %1273 = vst [vmem:[#allocation9 + $0x3d] sm:$0x1] %v1257
    %v1275 = vcombine.high %v875, %v875
    %v1277 = vunpack.c.l.s4 1966171168
    %v1278 = vunpack.c.0.s8 %v1277
    %v1279 = vlaneseq
    %v1280 = vshrl.u32 %v1279, 7
    %v1281 = vsub.s32 %v1278, %v1280
    %v1282 = vrot.slane %v875, %v1281
    %v1284 = vunpack.c.l.s4 1966171168
    %v1285 = vunpack.c.0.s8 %v1284
    %v1286 = vlaneseq
    %v1287 = vshrl.u32 %v1286, 7
    %v1288 = vsub.s32 %v1285, %v1287
    %v1289 = vrot.slane %v1275, %v1288
    %v1290 = vcombine.high %v1282, %v1282
    %v1291 = vcombine.high %v1289, %v1289
    %v1293 = vunpack.c.l.s4 1966171168
    %v1294 = vunpack.c.0.s8 %v1293
    %v1295 = vlaneseq
    %v1296 = vshrl.u32 %v1295, 7
    %v1297 = vsub.s32 %v1294, %v1296
    %v1298 = vrot.slane %v1282, %v1297
    %v1300 = vunpack.c.l.s4 1966171168
    %v1301 = vunpack.c.0.s8 %v1300
    %v1302 = vlaneseq
    %v1303 = vshrl.u32 %v1302, 7
    %v1304 = vsub.s32 %v1301, %v1303
    %v1305 = vrot.slane %v1289, %v1304
    %v1307 = vunpack.c.l.s4 1966171168
    %v1308 = vunpack.c.0.s8 %v1307
    %v1309 = vlaneseq
    %v1310 = vshrl.u32 %v1309, 7
    %v1311 = vsub.s32 %v1308, %v1310
    %v1312 = vrot.slane %v1290, %v1311
    %v1314 = vunpack.c.l.s4 1966171168
    %v1315 = vunpack.c.0.s8 %v1314
    %v1316 = vlaneseq
    %v1317 = vshrl.u32 %v1316, 7
    %v1318 = vsub.s32 %v1315, %v1317
    %v1319 = vrot.slane %v1291, %v1318
    %v1320 = vcombine.high %v1298, %v1298
    %v1321 = vcombine.high %v1305, %v1305
    %v1322 = vcombine.high %v1312, %v1312
    %v1323 = vcombine.high %v1319, %v1319
    %1332 = vst [vmem:[#allocation9 + $0x6] sm:$0x1] %v1298
    %1333 = vst [vmem:[#allocation9 + $0xe] sm:$0x1] %v1312
    %1334 = vst [vmem:[#allocation9 + $0x16] sm:$0x1] %v1320
    %1335 = vst [vmem:[#allocation9 + $0x1e] sm:$0x1] %v1322
    %1336 = vst [vmem:[#allocation9 + $0x26] sm:$0x1] %v1305
    %1337 = vst [vmem:[#allocation9 + $0x2e] sm:$0x1] %v1319
    %1338 = vst [vmem:[#allocation9 + $0x36] sm:$0x1] %v1321
    %1339 = vst [vmem:[#allocation9 + $0x3e] sm:$0x1] %v1323
    %v1341 = vcombine.high %v877, %v877
    %v1343 = vunpack.c.l.s4 1966171168
    %v1344 = vunpack.c.0.s8 %v1343
    %v1345 = vlaneseq
    %v1346 = vshrl.u32 %v1345, 7
    %v1347 = vsub.s32 %v1344, %v1346
    %v1348 = vrot.slane %v877, %v1347
    %v1350 = vunpack.c.l.s4 1966171168
    %v1351 = vunpack.c.0.s8 %v1350
    %v1352 = vlaneseq
    %v1353 = vshrl.u32 %v1352, 7
    %v1354 = vsub.s32 %v1351, %v1353
    %v1355 = vrot.slane %v1341, %v1354
    %v1356 = vcombine.high %v1348, %v1348
    %v1357 = vcombine.high %v1355, %v1355
    %v1359 = vunpack.c.l.s4 1966171168
    %v1360 = vunpack.c.0.s8 %v1359
    %v1361 = vlaneseq
    %v1362 = vshrl.u32 %v1361, 7
    %v1363 = vsub.s32 %v1360, %v1362
    %v1364 = vrot.slane %v1348, %v1363
    %v1366 = vunpack.c.l.s4 1966171168
    %v1367 = vunpack.c.0.s8 %v1366
    %v1368 = vlaneseq
    %v1369 = vshrl.u32 %v1368, 7
    %v1370 = vsub.s32 %v1367, %v1369
    %v1371 = vrot.slane %v1355, %v1370
    %v1373 = vunpack.c.l.s4 1966171168
    %v1374 = vunpack.c.0.s8 %v1373
    %v1375 = vlaneseq
    %v1376 = vshrl.u32 %v1375, 7
    %v1377 = vsub.s32 %v1374, %v1376
    %v1378 = vrot.slane %v1356, %v1377
    %v1380 = vunpack.c.l.s4 1966171168
    %v1381 = vunpack.c.0.s8 %v1380
    %v1382 = vlaneseq
    %v1383 = vshrl.u32 %v1382, 7
    %v1384 = vsub.s32 %v1381, %v1383
    %v1385 = vrot.slane %v1357, %v1384
    %v1386 = vcombine.high %v1364, %v1364
    %v1387 = vcombine.high %v1371, %v1371
    %v1388 = vcombine.high %v1378, %v1378
    %v1389 = vcombine.high %v1385, %v1385
    %1398 = vst [vmem:[#allocation9 + $0x7] sm:$0x1] %v1364
    %1399 = vst [vmem:[#allocation9 + $0xf] sm:$0x1] %v1378
    %1400 = vst [vmem:[#allocation9 + $0x17] sm:$0x1] %v1386
    %1401 = vst [vmem:[#allocation9 + $0x1f] sm:$0x1] %v1388
    %1402 = vst [vmem:[#allocation9 + $0x27] sm:$0x1] %v1371
    %1403 = vst [vmem:[#allocation9 + $0x2f] sm:$0x1] %v1385
    %1404 = vst [vmem:[#allocation9 + $0x37] sm:$0x1] %v1387
    %1405 = vst [vmem:[#allocation9 + $0x3f] sm:$0x1] %v1389
    // Predicated region
    $region34: #{tpu_custom_call.1} parent=1 // pred_check
      %p1406 = pneg %p53
    $region35: #{tpu_custom_call.1} parent=1 // pred_check_branch
      %1408 = sbr.rel (%p1406) target = $region37
    $region36: #{tpu_custom_call.1} parent=1 // pred_region
      %1409 = vst [vmem:[#allocation10] sm:$0xff] %v679
    $region37: #{tpu_custom_call.1} parent=1 // pred_fallthru
      _
    // Predicated region
    $region38: #{tpu_custom_call.1} parent=1 // pred_check
      _
    $region39: #{tpu_custom_call.1} parent=1 // pred_check_branch
      %1411 = sbr.rel (0) target = $region41
    $region40: #{tpu_custom_call.1} parent=1 // pred_region
      %s1413 = ssub.s32 1024, 1024
      %1414 = vsyncadd [#allocation6], %s1413
      %s1415 = sshll.u32 [#allocation9], 4
      %s1416 = int_to_ptr.vmem [resolvable:$true] %s1415
      %1421 = dma.vmem_to_hbm [thread:$0]  %s1416, 1024, %s5, [#allocation6], 128, 128, 8
    $region41: #{tpu_custom_call.1} parent=1 // pred_fallthru
      _
    // Predicated region
    $region42: #{tpu_custom_call.1} parent=1 // pred_check
      _
    $region43: #{tpu_custom_call.1} parent=1 // pred_check_branch
      %1423 = sbr.rel (0) target = $region45
    $region44: #{tpu_custom_call.1} parent=1 // pred_region
      %s1425 = ssub.s32 128, 128
      %1426 = vsyncadd [#allocation11], %s1425
      %s1428 = sshll.u32 [#allocation10], 4
      %s1429 = int_to_ptr.vmem [resolvable:$true] %s1428
      %1431 = dma.vmem_to_hbm [thread:$0]  %s1429, 128, %s6, [#allocation11]
    $region45: #{tpu_custom_call.1} parent=1 // pred_fallthru
      _
    // Predicated region
    $region46: #{tpu_custom_call.1} parent=1 // pred_check
      _
    $region47: #{tpu_custom_call.1} parent=1 // pred_check_branch
      %1433 = sbr.rel (0) target = $region49
    $region48: #{tpu_custom_call.1} parent=1 // pred_region
      %1434 = dma.done [#allocation6], 1024
    $region49: #{tpu_custom_call.1} parent=1 // pred_fallthru
      _
    // Predicated region
    $region50: #{tpu_custom_call.1} parent=1 // pred_check
      _
    $region51: #{tpu_custom_call.1} parent=1 // pred_check_branch
      %1436 = sbr.rel (0) target = $region53
    $region52: #{tpu_custom_call.1} parent=1 // pred_region
      %1437 = dma.done [#allocation11], 128
    $region53: #{tpu_custom_call.1} parent=1 // pred_fallthru
      _
    %1438 = vsyncpa [#allocation5], 1
    %1439 = vsyncpa [#allocation8], 1
    %1440 = vsyncpa [#allocation6], 1
    %1441 = vsyncpa [#allocation11], 1

</llo_original>
